<compile_context>
chip_gen: v7x
topology: tpu7x:2x2x1
jax: 0.10.0
libtpu: 0.0.40
codegen_flags: <defaults>
</compile_context>

<pallas_src>
import jax
import jax.numpy as jnp
from jax import lax
from jax.experimental import pallas as pl
from jax.experimental.pallas import tpu as pltpu

K = 5          # conv kernel size
PAD = 2        # conv padding
C1 = 16        # conv1 out channels
C2 = 32        # conv2 out channels
H1 = 16        # fc1 hidden
OUT = 3        # output_length
OUT_PAD = 8    # lane width of the kernel output block (full-array width)
EPS = 1e-5     # BatchNorm eps
CPAD = 128     # lane-dense padding for im2col / channels / fc dims
TB_CAP = 1024  # max batch rows per grid step


def xrr_kernel(x_ref, small_ref, w2_ref, fw1_ref, fw2_ref, out_ref):
    TB, L = x_ref.shape
    N = TB * L

    x = x_ref[...]                                              # (TB, L)
    small = small_ref[...]                                      # (16, 128) packed params

    # ---- in-kernel halo for conv1 (replaces the host-side jnp.pad).
    zhalo = jnp.zeros((TB, PAD), jnp.float32)
    xpad = jnp.concatenate([zhalo, x, zhalo], axis=1)           # (TB, L + 4)

    # ---- conv1 (1 -> 16, k=5, pad=2): 5 shifted broadcast-MACs on the VPU.
    acc1 = xpad[:, 0:L][:, :, None] * small[0, 0:C1]            # init with tap 0
    for k in range(1, K):
        acc1 = acc1 + xpad[:, k:k + L][:, :, None] * small[k, 0:C1]
    # folded eval-BN1 + conv bias, then ReLU
    a1 = jnp.maximum(acc1 * small[5, 0:C1] + small[6, 0:C1], 0.0)   # (TB, L, C1)
    a1f = a1.reshape(N, C1)                                     # (TB*L, 16)

    # ---- im2col for conv2: K shifted copies of a1 along L built with XLU rolls
    #      + halo masks (rolls wrap across batch rows, masks zero those spots).
    lpos = lax.broadcasted_iota(jnp.int32, (N, 1), 0) % L       # l within each row
    cols = []
    for k in range(K):
        sh = k - PAD                                            # col_k[r] = a1f[r + sh]
        if sh == 0:
            cols.append(a1f)
        else:
            rolled = pltpu.roll(a1f, shift=(-sh) % N, axis=0)
            valid = (lpos >= -sh) & (lpos < L - sh)             # 0 <= l + sh < L
            cols.append(jnp.where(valid, rolled, 0.0))
    cols.append(jnp.zeros((N, CPAD - K * C1), jnp.float32))     # pad 80 -> 128 lanes
    lhs = jnp.concatenate(cols, axis=1)                         # (TB*L, 128)

    # ---- conv2 (16 -> 32, k=5) as ONE 128-wide MXU matmul, folded BN2 + ReLU.
    acc2 = jnp.dot(lhs, w2_ref[...], preferred_element_type=jnp.float32)
    a2 = jnp.maximum(acc2 * small[7:8, :] + small[8:9, :], 0.0)     # (TB*L, 128)

    # ---- AdaptiveAvgPool1d(1): mean over L.
    pooled = jnp.sum(a2.reshape(TB, L, CPAD), axis=1) * (1.0 / L)   # (TB, 128)

    # ---- fc1 + ReLU, fc2 (narrow, lane-width-8 output block).
    h = jnp.maximum(jnp.dot(pooled, fw1_ref[...],
                            preferred_element_type=jnp.float32)
                    + small[9:10, :], 0.0)                      # (TB, 128)
    out_ref[...] = (jnp.dot(h, fw2_ref[...],
                            preferred_element_type=jnp.float32)
                    + small[10:11, 0:OUT_PAD])                  # (TB, 8)


def _vmem_capacity_bytes():
    try:
        cap = getattr(pltpu.get_tpu_info(), "vmem_capacity_bytes", None)
        if cap:
            return int(cap)
    except Exception:
        pass
    return 64 * 1024 * 1024       # conservative fallback (v7x per-TC VMEM)


def xrr_forward(x, p):
    """x: (B, L) float32 -> (B, OUT) float32."""
    B, L = x.shape
    x = x.astype(jnp.float32)

    # ---- fold parameters + pack small per-channel vectors into one (16,128) block.
    s1 = p["bn1_gamma"] / jnp.sqrt(p["bn1_var"] + EPS)
    b1 = (p["conv1_b"] - p["bn1_mean"]) * s1 + p["bn1_beta"]
    s2 = p["bn2_gamma"] / jnp.sqrt(p["bn2_var"] + EPS)
    b2 = (p["conv2_b"] - p["bn2_mean"]) * s2 + p["bn2_beta"]

    w1r = jnp.transpose(p["conv1_w"][:, 0, :], (1, 0))          # (K, C1)
    small = jnp.zeros((16, CPAD), jnp.float32)
    small = small.at[0:K, 0:C1].set(w1r)                        # rows 0..4: conv1 taps
    small = small.at[5, 0:C1].set(s1)                           # BN1 scale (folded)
    small = small.at[6, 0:C1].set(b1)                           # BN1 shift + conv1 bias
    small = small.at[7, 0:C2].set(s2)                           # BN2 scale
    small = small.at[8, 0:C2].set(b2)                           # BN2 shift + conv2 bias
    small = small.at[9, 0:H1].set(p["fc1_b"])                   # fc1 bias
    small = small.at[10, 0:OUT].set(p["fc2_b"])                 # fc2 bias

    # conv2 weight (C2, C1, K) -> im2col layout (K*C1, C2), zero-padded to 128x128.
    w2r = jnp.transpose(p["conv2_w"], (2, 1, 0)).reshape(K * C1, C2)
    w2p = jnp.zeros((CPAD, CPAD), jnp.float32).at[:K * C1, :C2].set(w2r)
    fw1p = jnp.zeros((CPAD, CPAD), jnp.float32).at[:C2, :H1].set(p["fc1_w"].T)
    fw2p = jnp.zeros((CPAD, OUT_PAD), jnp.float32).at[:H1, :OUT].set(p["fc2_w"].T)

    # ---- VMEM limit per chip generation (physical: v5e/v6e 128 MiB, v7x 64 MiB).
    vmem_cap = _vmem_capacity_bytes()
    vmem_limit = int(vmem_cap * 0.75)             # ~96 MiB v5e/v6e, ~48 MiB v7x
    budget = int(vmem_limit * 0.70)               # share for per-tile live values
    fixed = 2 * 1024 * 1024                       # resident weight blocks + headroom
    # per-row live bytes: lhs (512L) + pre-concat im2col cols + a1 + a2 + io blocks
    per_row = 2816 * L + 512

    tb_vmem = max(8, ((budget - fixed) // per_row) // 8 * 8)
    b8 = ((B + 7) // 8) * 8
    TB = max(8, min(TB_CAP, tb_vmem, b8))
    # v7x has 2 TensorCores: make sure the "parallel" grid has >= 2 steps
    # whenever the batch is big enough to split.
    if b8 > 8 and TB >= b8:
        TB = ((b8 + 15) // 16) * 8

    # Batch remainder only (no L padding, no copy at all when B % TB == 0).
    Bp = ((B + TB - 1) // TB) * TB
    if Bp != B:
        x = jnp.pad(x, ((0, Bp - B), (0, 0)))

    const = lambda i: (0, 0)
    out = pl.pallas_call(
        xrr_kernel,
        out_shape=jax.ShapeDtypeStruct((Bp, OUT_PAD), jnp.float32),
        grid=(Bp // TB,),
        in_specs=[
            pl.BlockSpec((TB, L), lambda i: (i, 0)),             # x
            pl.BlockSpec((16, CPAD), const),                     # packed small params
            pl.BlockSpec((CPAD, CPAD), const),                   # conv2 im2col weight
            pl.BlockSpec((CPAD, CPAD), const),                   # fc1 weight
            pl.BlockSpec((CPAD, OUT_PAD), const),                # fc2 weight (narrow)
        ],
        out_specs=pl.BlockSpec((TB, OUT_PAD), lambda i: (i, 0)),
        compiler_params=pltpu.CompilerParams(
            dimension_semantics=("parallel",),
            vmem_limit_bytes=vmem_limit),
    )(x, small, w2p, fw1p, fw2p)

    return out[:B, :OUT]


def reference(x, p):
    """Pure-JAX reference matching the PyTorch forward (eval-mode BN)."""
    dn = ("NCH", "OIH", "NCH")
    y = lax.conv_general_dilated(x[:, None, :], p["conv1_w"], (1,),
                                 [(PAD, PAD)], dimension_numbers=dn)
    y = y + p["conv1_b"][None, :, None]
    y = ((y - p["bn1_mean"][None, :, None])
         / jnp.sqrt(p["bn1_var"][None, :, None] + EPS)
         * p["bn1_gamma"][None, :, None] + p["bn1_beta"][None, :, None])
    y = jnp.maximum(y, 0.0)
    y = lax.conv_general_dilated(y, p["conv2_w"], (1,),
                                 [(PAD, PAD)], dimension_numbers=dn)
    y = y + p["conv2_b"][None, :, None]
    y = ((y - p["bn2_mean"][None, :, None])
         / jnp.sqrt(p["bn2_var"][None, :, None] + EPS)
         * p["bn2_gamma"][None, :, None] + p["bn2_beta"][None, :, None])
    y = jnp.maximum(y, 0.0)
    pooled = jnp.mean(y, axis=2)
    h = jnp.maximum(pooled @ p["fc1_w"].T + p["fc1_b"], 0.0)
    return h @ p["fc2_w"].T + p["fc2_b"]


def init_params(key):
    ks = jax.random.split(key, 16)
    u = lambda k, s, lo, hi: jax.random.uniform(k, s, jnp.float32, lo, hi)
    n = lambda k, s, sc: sc * jax.random.normal(k, s, jnp.float32)
    return {
        "conv1_w": n(ks[0], (C1, 1, K), 0.3), "conv1_b": n(ks[1], (C1,), 0.1),
        "bn1_gamma": u(ks[2], (C1,), 0.8, 1.2), "bn1_beta": n(ks[3], (C1,), 0.1),
        "bn1_mean": n(ks[4], (C1,), 0.1), "bn1_var": u(ks[5], (C1,), 0.5, 1.5),
        "conv2_w": n(ks[6], (C2, C1, K), 0.1), "conv2_b": n(ks[7], (C2,), 0.1),
        "bn2_gamma": u(ks[8], (C2,), 0.8, 1.2), "bn2_beta": n(ks[9], (C2,), 0.1),
        "bn2_mean": n(ks[10], (C2,), 0.1), "bn2_var": u(ks[11], (C2,), 0.5, 1.5),
        "fc1_w": n(ks[12], (H1, C2), 0.2), "fc1_b": n(ks[13], (H1,), 0.1),
        "fc2_w": n(ks[14], (OUT, H1), 0.2), "fc2_b": n(ks[15], (OUT,), 0.1),
    }


if __name__ == "__main__":
    B, L = 2, 16
    key = jax.random.PRNGKey(0)
    kx, kp = jax.random.split(key)
    x = jax.random.normal(kx, (B, L), jnp.float32)
    params = init_params(kp)

    fwd = jax.jit(xrr_forward)
    out = jax.block_until_ready(fwd(x, params))
    ref = jax.block_until_ready(reference(x, params))

    assert out.shape == (B, OUT), out.shape
    assert jnp.allclose(out, ref, rtol=1e-4, atol=1e-4), (out, ref)
    print("KERNEL_OK")
</pallas_src>

<mosaic_0001>
module attributes {stable_mosaic.version = 11 : i64} {
  func.func @xrr_kernel(%arg0: i32, %arg1: memref<8x16xf32, #tpu.memory_space<vmem>>, %arg2: memref<16x128xf32, #tpu.memory_space<vmem>>, %arg3: memref<128x128xf32, #tpu.memory_space<vmem>>, %arg4: memref<128x128xf32, #tpu.memory_space<vmem>>, %arg5: memref<128x8xf32, #tpu.memory_space<vmem>>, %arg6: memref<8x8xf32, #tpu.memory_space<vmem>>) attributes {dimension_semantics = [#tpu.dimension_semantics<parallel>], iteration_bounds = array<i64: 1>, scalar_prefetch = 0 : i64, scratch_operands = 0 : i64, tpu.core_type = #tpu.core_type<tc>, window_params = [{transform_indices = @transform_0, window_bounds = array<i64: 8, 16>}, {pipeline_mode = #tpu.pipeline_mode<synchronous>, transform_indices = @transform_1, window_bounds = array<i64: 16, 128>}, {pipeline_mode = #tpu.pipeline_mode<synchronous>, transform_indices = @transform_2, window_bounds = array<i64: 128, 128>}, {pipeline_mode = #tpu.pipeline_mode<synchronous>, transform_indices = @transform_3, window_bounds = array<i64: 128, 128>}, {pipeline_mode = #tpu.pipeline_mode<synchronous>, transform_indices = @transform_4, window_bounds = array<i64: 128, 8>}, {transform_indices = @transform_5, window_bounds = array<i64: 8, 8>}]} {
    %c0 = arith.constant 0 : index
    %c0_0 = arith.constant 0 : index
    %0 = vector.load %arg1[%c0, %c0_0] : memref<8x16xf32, #tpu.memory_space<vmem>>, vector<8x16xf32>
    %c0_1 = arith.constant 0 : index
    %c0_2 = arith.constant 0 : index
    %1 = vector.load %arg2[%c0_1, %c0_2] : memref<16x128xf32, #tpu.memory_space<vmem>>, vector<16x128xf32>
    %cst = arith.constant 0.000000e+00 : f32
    %2 = vector.broadcast %cst : f32 to vector<8x2xf32>
    %3 = tpu.concatenate %2, %0, %2 in 1 : vector<8x2xf32>, vector<8x16xf32>, vector<8x2xf32> -> vector<8x20xf32>
    %4 = vector.extract_strided_slice %3 {offsets = [0, 0], sizes = [8, 16], strides = [1, 1]} : vector<8x20xf32> to vector<8x16xf32>
    %5 = vector.shape_cast %4 : vector<8x16xf32> to vector<8x16x1xf32>
    %6 = vector.extract_strided_slice %1 {offsets = [0, 0], sizes = [1, 16], strides = [1, 1]} : vector<16x128xf32> to vector<1x16xf32>
    %7 = vector.shape_cast %6 : vector<1x16xf32> to vector<16xf32>
    %8 = vector.shape_cast %7 : vector<16xf32> to vector<1x1x16xf32>
    %9 = vector.broadcast %5 : vector<8x16x1xf32> to vector<8x16x16xf32>
    %10 = vector.broadcast %8 : vector<1x1x16xf32> to vector<8x16x16xf32>
    %11 = arith.mulf %9, %10 : vector<8x16x16xf32>
    %12 = vector.extract_strided_slice %3 {offsets = [0, 1], sizes = [8, 16], strides = [1, 1]} : vector<8x20xf32> to vector<8x16xf32>
    %13 = vector.shape_cast %12 : vector<8x16xf32> to vector<8x16x1xf32>
    %14 = vector.extract_strided_slice %1 {offsets = [1, 0], sizes = [1, 16], strides = [1, 1]} : vector<16x128xf32> to vector<1x16xf32>
    %15 = vector.shape_cast %14 : vector<1x16xf32> to vector<16xf32>
    %16 = vector.shape_cast %15 : vector<16xf32> to vector<1x1x16xf32>
    %17 = vector.broadcast %13 : vector<8x16x1xf32> to vector<8x16x16xf32>
    %18 = vector.broadcast %16 : vector<1x1x16xf32> to vector<8x16x16xf32>
    %19 = arith.mulf %17, %18 : vector<8x16x16xf32>
    %20 = arith.addf %11, %19 : vector<8x16x16xf32>
    %21 = vector.extract_strided_slice %3 {offsets = [0, 2], sizes = [8, 16], strides = [1, 1]} : vector<8x20xf32> to vector<8x16xf32>
    %22 = vector.shape_cast %21 : vector<8x16xf32> to vector<8x16x1xf32>
    %23 = vector.extract_strided_slice %1 {offsets = [2, 0], sizes = [1, 16], strides = [1, 1]} : vector<16x128xf32> to vector<1x16xf32>
    %24 = vector.shape_cast %23 : vector<1x16xf32> to vector<16xf32>
    %25 = vector.shape_cast %24 : vector<16xf32> to vector<1x1x16xf32>
    %26 = vector.broadcast %22 : vector<8x16x1xf32> to vector<8x16x16xf32>
    %27 = vector.broadcast %25 : vector<1x1x16xf32> to vector<8x16x16xf32>
    %28 = arith.mulf %26, %27 : vector<8x16x16xf32>
    %29 = arith.addf %20, %28 : vector<8x16x16xf32>
    %30 = vector.extract_strided_slice %3 {offsets = [0, 3], sizes = [8, 16], strides = [1, 1]} : vector<8x20xf32> to vector<8x16xf32>
    %31 = vector.shape_cast %30 : vector<8x16xf32> to vector<8x16x1xf32>
    %32 = vector.extract_strided_slice %1 {offsets = [3, 0], sizes = [1, 16], strides = [1, 1]} : vector<16x128xf32> to vector<1x16xf32>
    %33 = vector.shape_cast %32 : vector<1x16xf32> to vector<16xf32>
    %34 = vector.shape_cast %33 : vector<16xf32> to vector<1x1x16xf32>
    %35 = vector.broadcast %31 : vector<8x16x1xf32> to vector<8x16x16xf32>
    %36 = vector.broadcast %34 : vector<1x1x16xf32> to vector<8x16x16xf32>
    %37 = arith.mulf %35, %36 : vector<8x16x16xf32>
    %38 = arith.addf %29, %37 : vector<8x16x16xf32>
    %39 = vector.extract_strided_slice %3 {offsets = [0, 4], sizes = [8, 16], strides = [1, 1]} : vector<8x20xf32> to vector<8x16xf32>
    %40 = vector.shape_cast %39 : vector<8x16xf32> to vector<8x16x1xf32>
    %41 = vector.extract_strided_slice %1 {offsets = [4, 0], sizes = [1, 16], strides = [1, 1]} : vector<16x128xf32> to vector<1x16xf32>
    %42 = vector.shape_cast %41 : vector<1x16xf32> to vector<16xf32>
    %43 = vector.shape_cast %42 : vector<16xf32> to vector<1x1x16xf32>
    %44 = vector.broadcast %40 : vector<8x16x1xf32> to vector<8x16x16xf32>
    %45 = vector.broadcast %43 : vector<1x1x16xf32> to vector<8x16x16xf32>
    %46 = arith.mulf %44, %45 : vector<8x16x16xf32>
    %47 = arith.addf %38, %46 : vector<8x16x16xf32>
    %48 = vector.extract_strided_slice %1 {offsets = [5, 0], sizes = [1, 16], strides = [1, 1]} : vector<16x128xf32> to vector<1x16xf32>
    %49 = vector.shape_cast %48 : vector<1x16xf32> to vector<16xf32>
    %50 = vector.shape_cast %49 : vector<16xf32> to vector<1x1x16xf32>
    %51 = vector.broadcast %50 : vector<1x1x16xf32> to vector<8x16x16xf32>
    %52 = arith.mulf %47, %51 : vector<8x16x16xf32>
    %53 = vector.extract_strided_slice %1 {offsets = [6, 0], sizes = [1, 16], strides = [1, 1]} : vector<16x128xf32> to vector<1x16xf32>
    %54 = vector.shape_cast %53 : vector<1x16xf32> to vector<16xf32>
    %55 = vector.shape_cast %54 : vector<16xf32> to vector<1x1x16xf32>
    %56 = vector.broadcast %55 : vector<1x1x16xf32> to vector<8x16x16xf32>
    %57 = arith.addf %52, %56 : vector<8x16x16xf32>
    %cst_3 = arith.constant 0.000000e+00 : f32
    %58 = vector.broadcast %cst_3 : f32 to vector<8x16x16xf32>
    %59 = arith.maximumf %57, %58 : vector<8x16x16xf32>
    %60 = vector.shape_cast %59 : vector<8x16x16xf32> to vector<128x16xf32>
    %61 = tpu.iota {dimensions = array<i32: 0>} : vector<128x1xi32>
    %c16_i32 = arith.constant 16 : i32
    %c0_i32 = arith.constant 0 : i32
    %62 = arith.cmpi eq, %c16_i32, %c0_i32 : i32
    %c1_i32 = arith.constant 1 : i32
    %63 = arith.select %62, %c1_i32, %c16_i32 : i32
    %64 = vector.broadcast %63 : i32 to vector<128x1xi32>
    %65 = arith.remsi %61, %64 : vector<128x1xi32>
    %c0_i32_4 = arith.constant 0 : i32
    %66 = vector.broadcast %c0_i32_4 : i32 to vector<128x1xi32>
    %67 = arith.cmpi ne, %65, %66 : vector<128x1xi32>
    %c0_i32_5 = arith.constant 0 : i32
    %68 = vector.broadcast %c0_i32_5 : i32 to vector<128x1xi32>
    %69 = arith.cmpi slt, %65, %68 : vector<128x1xi32>
    %c0_i32_6 = arith.constant 0 : i32
    %70 = arith.cmpi slt, %63, %c0_i32_6 : i32
    %71 = vector.broadcast %70 : i1 to vector<128x1xi1>
    %72 = vector.broadcast %71 : vector<128x1xi1> to vector<128x1xi1>
    %73 = arith.xori %69, %72 : vector<128x1xi1>
    %74 = arith.andi %73, %67 : vector<128x1xi1>
    %75 = vector.broadcast %63 : i32 to vector<128x1xi32>
    %76 = arith.addi %65, %75 : vector<128x1xi32>
    %77 = arith.select %74, %76, %65 : vector<128x1xi1>, vector<128x1xi32>
    %c2_i32 = arith.constant 2 : i32
    %78 = tpu.dynamic_rotate %60 by %c2_i32 dim 0 : vector<128x16xf32>, i32 -> vector<128x16xf32>
    %c2_i32_7 = arith.constant 2 : i32
    %79 = vector.broadcast %c2_i32_7 : i32 to vector<128x1xi32>
    %80 = arith.cmpi sge, %77, %79 : vector<128x1xi32>
    %c18_i32 = arith.constant 18 : i32
    %81 = vector.broadcast %c18_i32 : i32 to vector<128x1xi32>
    %82 = arith.cmpi slt, %77, %81 : vector<128x1xi32>
    %83 = arith.andi %80, %82 : vector<128x1xi1>
    %cst_8 = arith.constant 0.000000e+00 : f32
    %84 = vector.shape_cast %83 : vector<128x1xi1> to vector<128x1xi1>
    %85 = vector.broadcast %84 : vector<128x1xi1> to vector<128x16xi1>
    %86 = vector.broadcast %cst_8 : f32 to vector<128x16xf32>
    %87 = arith.select %85, %78, %86 : vector<128x16xi1>, vector<128x16xf32>
    %c1_i32_9 = arith.constant 1 : i32
    %88 = tpu.dynamic_rotate %60 by %c1_i32_9 dim 0 : vector<128x16xf32>, i32 -> vector<128x16xf32>
    %c1_i32_10 = arith.constant 1 : i32
    %89 = vector.broadcast %c1_i32_10 : i32 to vector<128x1xi32>
    %90 = arith.cmpi sge, %77, %89 : vector<128x1xi32>
    %c17_i32 = arith.constant 17 : i32
    %91 = vector.broadcast %c17_i32 : i32 to vector<128x1xi32>
    %92 = arith.cmpi slt, %77, %91 : vector<128x1xi32>
    %93 = arith.andi %90, %92 : vector<128x1xi1>
    %cst_11 = arith.constant 0.000000e+00 : f32
    %94 = vector.shape_cast %93 : vector<128x1xi1> to vector<128x1xi1>
    %95 = vector.broadcast %94 : vector<128x1xi1> to vector<128x16xi1>
    %96 = vector.broadcast %cst_11 : f32 to vector<128x16xf32>
    %97 = arith.select %95, %88, %96 : vector<128x16xi1>, vector<128x16xf32>
    %c127_i32 = arith.constant 127 : i32
    %98 = tpu.dynamic_rotate %60 by %c127_i32 dim 0 : vector<128x16xf32>, i32 -> vector<128x16xf32>
    %c-1_i32 = arith.constant -1 : i32
    %99 = vector.broadcast %c-1_i32 : i32 to vector<128x1xi32>
    %100 = arith.cmpi sge, %77, %99 : vector<128x1xi32>
    %c15_i32 = arith.constant 15 : i32
    %101 = vector.broadcast %c15_i32 : i32 to vector<128x1xi32>
    %102 = arith.cmpi slt, %77, %101 : vector<128x1xi32>
    %103 = arith.andi %100, %102 : vector<128x1xi1>
    %cst_12 = arith.constant 0.000000e+00 : f32
    %104 = vector.shape_cast %103 : vector<128x1xi1> to vector<128x1xi1>
    %105 = vector.broadcast %104 : vector<128x1xi1> to vector<128x16xi1>
    %106 = vector.broadcast %cst_12 : f32 to vector<128x16xf32>
    %107 = arith.select %105, %98, %106 : vector<128x16xi1>, vector<128x16xf32>
    %c126_i32 = arith.constant 126 : i32
    %108 = tpu.dynamic_rotate %60 by %c126_i32 dim 0 : vector<128x16xf32>, i32 -> vector<128x16xf32>
    %c-2_i32 = arith.constant -2 : i32
    %109 = vector.broadcast %c-2_i32 : i32 to vector<128x1xi32>
    %110 = arith.cmpi sge, %77, %109 : vector<128x1xi32>
    %c14_i32 = arith.constant 14 : i32
    %111 = vector.broadcast %c14_i32 : i32 to vector<128x1xi32>
    %112 = arith.cmpi slt, %77, %111 : vector<128x1xi32>
    %113 = arith.andi %110, %112 : vector<128x1xi1>
    %cst_13 = arith.constant 0.000000e+00 : f32
    %114 = vector.shape_cast %113 : vector<128x1xi1> to vector<128x1xi1>
    %115 = vector.broadcast %114 : vector<128x1xi1> to vector<128x16xi1>
    %116 = vector.broadcast %cst_13 : f32 to vector<128x16xf32>
    %117 = arith.select %115, %108, %116 : vector<128x16xi1>, vector<128x16xf32>
    %cst_14 = arith.constant 0.000000e+00 : f32
    %118 = vector.broadcast %cst_14 : f32 to vector<128x48xf32>
    %119 = tpu.concatenate %87, %97, %60, %107, %117, %118 in 1 : vector<128x16xf32>, vector<128x16xf32>, vector<128x16xf32>, vector<128x16xf32>, vector<128x16xf32>, vector<128x48xf32> -> vector<128x128xf32>
    %c0_15 = arith.constant 0 : index
    %c0_16 = arith.constant 0 : index
    %120 = vector.load %arg3[%c0_15, %c0_16] : memref<128x128xf32, #tpu.memory_space<vmem>>, vector<128x128xf32>
    %cst_17 = arith.constant dense<0.000000e+00> : vector<128x128xf32>
    %121 = tpu.matmul %119, %120, %cst_17 {dimension_numbers = #tpu.dot_dimension_numbers<[1], [0], [0], [1], [0, 0, 1, 1], [], []>} : vector<128x128xf32>, vector<128x128xf32>, vector<128x128xf32> -> vector<128x128xf32>
    %122 = vector.extract_strided_slice %1 {offsets = [7, 0], sizes = [1, 128], strides = [1, 1]} : vector<16x128xf32> to vector<1x128xf32>
    %123 = vector.broadcast %122 : vector<1x128xf32> to vector<128x128xf32>
    %124 = arith.mulf %121, %123 : vector<128x128xf32>
    %125 = vector.extract_strided_slice %1 {offsets = [8, 0], sizes = [1, 128], strides = [1, 1]} : vector<16x128xf32> to vector<1x128xf32>
    %126 = vector.broadcast %125 : vector<1x128xf32> to vector<128x128xf32>
    %127 = arith.addf %124, %126 : vector<128x128xf32>
    %cst_18 = arith.constant 0.000000e+00 : f32
    %128 = vector.broadcast %cst_18 : f32 to vector<128x128xf32>
    %129 = arith.maximumf %127, %128 : vector<128x128xf32>
    %130 = vector.shape_cast %129 : vector<128x128xf32> to vector<8x16x128xf32>
    %cst_19 = arith.constant dense<0.000000e+00> : vector<8x128xf32>
    %131 = vector.multi_reduction <add>, %130, %cst_19 [1] : vector<8x16x128xf32> to vector<8x128xf32>
    %cst_20 = arith.constant 6.250000e-02 : f32
    %132 = vector.broadcast %cst_20 : f32 to vector<8x128xf32>
    %133 = arith.mulf %131, %132 : vector<8x128xf32>
    %c0_21 = arith.constant 0 : index
    %c0_22 = arith.constant 0 : index
    %134 = vector.load %arg4[%c0_21, %c0_22] : memref<128x128xf32, #tpu.memory_space<vmem>>, vector<128x128xf32>
    %cst_23 = arith.constant dense<0.000000e+00> : vector<8x128xf32>
    %135 = tpu.matmul %133, %134, %cst_23 {dimension_numbers = #tpu.dot_dimension_numbers<[1], [0], [0], [1], [0, 0, 1, 1], [], []>} : vector<8x128xf32>, vector<128x128xf32>, vector<8x128xf32> -> vector<8x128xf32>
    %136 = vector.extract_strided_slice %1 {offsets = [9, 0], sizes = [1, 128], strides = [1, 1]} : vector<16x128xf32> to vector<1x128xf32>
    %137 = vector.broadcast %136 : vector<1x128xf32> to vector<8x128xf32>
    %138 = arith.addf %135, %137 : vector<8x128xf32>
    %cst_24 = arith.constant 0.000000e+00 : f32
    %139 = vector.broadcast %cst_24 : f32 to vector<8x128xf32>
    %140 = arith.maximumf %138, %139 : vector<8x128xf32>
    %c0_25 = arith.constant 0 : index
    %c0_26 = arith.constant 0 : index
    %141 = vector.load %arg5[%c0_25, %c0_26] : memref<128x8xf32, #tpu.memory_space<vmem>>, vector<128x8xf32>
    %cst_27 = arith.constant dense<0.000000e+00> : vector<8x8xf32>
    %142 = tpu.matmul %140, %141, %cst_27 {dimension_numbers = #tpu.dot_dimension_numbers<[1], [0], [0], [1], [0, 0, 1, 1], [], []>} : vector<8x128xf32>, vector<128x8xf32>, vector<8x8xf32> -> vector<8x8xf32>
    %143 = vector.extract_strided_slice %1 {offsets = [10, 0], sizes = [1, 8], strides = [1, 1]} : vector<16x128xf32> to vector<1x8xf32>
    %144 = vector.broadcast %143 : vector<1x8xf32> to vector<8x8xf32>
    %145 = arith.addf %142, %144 : vector<8x8xf32>
    %c0_28 = arith.constant 0 : index
    %c0_29 = arith.constant 0 : index
    %146 = vector.load %arg6[%c0_28, %c0_29] : memref<8x8xf32, #tpu.memory_space<vmem>>, vector<8x8xf32>
    tpu.vector_store %arg6[%c0_28, %c0_29], %145 {strides = array<i32>} : memref<8x8xf32, #tpu.memory_space<vmem>>, vector<8x8xf32>,
    return
  }
  func.func @transform_0(%arg0: i32) -> (i32, i32) {
    %c0_i32 = arith.constant 0 : i32
    %c0_i32_0 = arith.constant 0 : i32
    return %arg0, %c0_i32 : i32, i32
  }
  func.func @transform_1(%arg0: i32) -> (i32, i32) {
    %c0_i32 = arith.constant 0 : i32
    %c0_i32_0 = arith.constant 0 : i32
    %c0_i32_1 = arith.constant 0 : i32
    return %c0_i32, %c0_i32_0 : i32, i32
  }
  func.func @transform_2(%arg0: i32) -> (i32, i32) {
    %c0_i32 = arith.constant 0 : i32
    %c0_i32_0 = arith.constant 0 : i32
    %c0_i32_1 = arith.constant 0 : i32
    return %c0_i32, %c0_i32_0 : i32, i32
  }
  func.func @transform_3(%arg0: i32) -> (i32, i32) {
    %c0_i32 = arith.constant 0 : i32
    %c0_i32_0 = arith.constant 0 : i32
    %c0_i32_1 = arith.constant 0 : i32
    return %c0_i32, %c0_i32_0 : i32, i32
  }
  func.func @transform_4(%arg0: i32) -> (i32, i32) {
    %c0_i32 = arith.constant 0 : i32
    %c0_i32_0 = arith.constant 0 : i32
    %c0_i32_1 = arith.constant 0 : i32
    return %c0_i32, %c0_i32_0 : i32, i32
  }
  func.func @transform_5(%arg0: i32) -> (i32, i32) {
    %c0_i32 = arith.constant 0 : i32
    %c0_i32_0 = arith.constant 0 : i32
    return %arg0, %c0_i32 : i32, i32
  }
}

</mosaic_0001>

<llo_original>
// kernel: xrr_forward.1
$region0: #{xrr_forward.1}
  #allocation0 [shape = 'u32[]', space=smem, size = 0x4, offset = 0x4, fixed_abs, tag = 'smem constant byte address 0x4 - core index']
  #allocation1 [shape = 'u32[144,128]{1,0:T(1,128)}', space=vmem, size = 0x12000, scoped, tag = 'internal scratch']
  %s0 = inlined_call_operand.vmem [shape: f32[8,16], index: 0, kind: input, shape index: {}]
  %s1 = inlined_call_operand.vmem [shape: f32[16,128], index: 1, kind: input, shape index: {}]
  %s2 = inlined_call_operand.vmem [shape: f32[128,128], index: 2, kind: input, shape index: {}]
  %s3 = inlined_call_operand.vmem [shape: f32[128,128], index: 3, kind: input, shape index: {}]
  %s4 = inlined_call_operand.vmem [shape: f32[128,8], index: 4, kind: input, shape index: {}]
  %s5 = inlined_call_operand.vmem [shape: f32[8,8], index: 5, kind: output, shape index: {}]
  %s6 = sld [smem:[#allocation0]]
  $region30: #{xrr_forward.1} parent=0
    _
  %s8 = ssub.s32 1, %s6
  %s9 = scalar_select 0, %s8, %s6
  // Predicated region
  $region2: #{xrr_forward.1} parent=0 // pred_check
    _
  $region3: #{xrr_forward.1} parent=0 // pred_check_branch
    %11 = sbr.rel (0) target = $region5
  $region4: #{xrr_forward.1} parent=0 // pred_region
    _
  $region5: #{xrr_forward.1} parent=0 // pred_fallthru
    _
  // Predicated region
  $region6: #{xrr_forward.1} parent=0 // pred_check
    _
  $region7: #{xrr_forward.1} parent=0 // pred_check_branch
    %13 = sbr.rel (0) target = $region9
  $region8: #{xrr_forward.1} parent=0 // pred_region
    _
  $region9: #{xrr_forward.1} parent=0 // pred_fallthru
    _
  // Predicated region
  $region10: #{xrr_forward.1} parent=0 // pred_check
    _
  $region11: #{xrr_forward.1} parent=0 // pred_check_branch
    %15 = sbr.rel (0) target = $region13
  $region12: #{xrr_forward.1} parent=0 // pred_region
    _
  $region13: #{xrr_forward.1} parent=0 // pred_fallthru
    _
  // Predicated region
  $region14: #{xrr_forward.1} parent=0 // pred_check
    _
  $region15: #{xrr_forward.1} parent=0 // pred_check_branch
    %17 = sbr.rel (0) target = $region17
  $region16: #{xrr_forward.1} parent=0 // pred_region
    _
  $region17: #{xrr_forward.1} parent=0 // pred_fallthru
    _
  // Predicated region
  $region18: #{xrr_forward.1} parent=0 // pred_check
    _
  $region19: #{xrr_forward.1} parent=0 // pred_check_branch
    %19 = sbr.rel (0) target = $region21
  $region20: #{xrr_forward.1} parent=0 // pred_region
    _
  $region21: #{xrr_forward.1} parent=0 // pred_fallthru
    _
  %v20 = vld [vmem:[%s0] sm:$0xff]
  %v21 = vld [vmem:[%s1] sm:$0xff]
  %v22 = vld [vmem:[%s1 + $0x8] sm:$0xff]
  %24 = vrot.lane.b32.xlu0 %v20, 2
  %v25 = vpop.permute.xlu0 %24
  %vm27 = vcmask 15360
  %v28 = vsel %vm27, 0.0, %v25
  %vm29 = vcmask 146432
  %v30 = vsel %vm29, %v28, 0.0
  %v31 = vlaneseq
  %v32 = vshrl.u32 %v31, 7
  %v33 = vsub.s32 0, %v32
  %v34 = vrot.slane %v30, %v33
  %36 = vbcast.lane.b32.xlu0 %v34, 256
  %v37 = vpop.permute.xlu0 %36
  %s39 = sor.u32 256, 8
  %40 = vbcast.lane.b32.xlu0 %v34, %s39
  %v41 = vpop.permute.xlu0 %40
  %v42 = vlaneseq
  %v43 = vshrl.u32 %v42, 7
  %v44 = vsub.s32 1, %v43
  %v45 = vrot.slane %v30, %v44
  %47 = vbcast.lane.b32.xlu0 %v45, 256
  %v48 = vpop.permute.xlu0 %47
  %s50 = sor.u32 256, 8
  %51 = vbcast.lane.b32.xlu0 %v45, %s50
  %v52 = vpop.permute.xlu0 %51
  %v53 = vlaneseq
  %v54 = vshrl.u32 %v53, 7
  %v55 = vsub.s32 2, %v54
  %v56 = vrot.slane %v30, %v55
  %58 = vbcast.lane.b32.xlu0 %v56, 256
  %v59 = vpop.permute.xlu0 %58
  %s61 = sor.u32 256, 8
  %62 = vbcast.lane.b32.xlu0 %v56, %s61
  %v63 = vpop.permute.xlu0 %62
  %v64 = vlaneseq
  %v65 = vshrl.u32 %v64, 7
  %v66 = vsub.s32 3, %v65
  %v67 = vrot.slane %v30, %v66
  %69 = vbcast.lane.b32.xlu0 %v67, 256
  %v70 = vpop.permute.xlu0 %69
  %s72 = sor.u32 256, 8
  %73 = vbcast.lane.b32.xlu0 %v67, %s72
  %v74 = vpop.permute.xlu0 %73
  %v75 = vlaneseq
  %v76 = vshrl.u32 %v75, 7
  %v77 = vsub.s32 4, %v76
  %v78 = vrot.slane %v30, %v77
  %80 = vbcast.lane.b32.xlu0 %v78, 256
  %v81 = vpop.permute.xlu0 %80
  %s83 = sor.u32 256, 8
  %84 = vbcast.lane.b32.xlu0 %v78, %s83
  %v85 = vpop.permute.xlu0 %84
  %v86 = vlaneseq
  %v87 = vshrl.u32 %v86, 7
  %v88 = vsub.s32 5, %v87
  %v89 = vrot.slane %v30, %v88
  %91 = vbcast.lane.b32.xlu0 %v89, 256
  %v92 = vpop.permute.xlu0 %91
  %s94 = sor.u32 256, 8
  %95 = vbcast.lane.b32.xlu0 %v89, %s94
  %v96 = vpop.permute.xlu0 %95
  %v97 = vlaneseq
  %v98 = vshrl.u32 %v97, 7
  %v99 = vsub.s32 6, %v98
  %v100 = vrot.slane %v30, %v99
  %102 = vbcast.lane.b32.xlu0 %v100, 256
  %v103 = vpop.permute.xlu0 %102
  %s105 = sor.u32 256, 8
  %106 = vbcast.lane.b32.xlu0 %v100, %s105
  %v107 = vpop.permute.xlu0 %106
  %v108 = vlaneseq
  %v109 = vshrl.u32 %v108, 7
  %v110 = vsub.s32 7, %v109
  %v111 = vrot.slane %v30, %v110
  %113 = vbcast.lane.b32.xlu0 %v111, 256
  %v114 = vpop.permute.xlu0 %113
  %s116 = sor.u32 256, 8
  %117 = vbcast.lane.b32.xlu0 %v111, %s116
  %v118 = vpop.permute.xlu0 %117
  %v119 = vlaneseq
  %v120 = vshrl.u32 %v119, 7
  %v121 = vsub.s32 0, %v120
  %v122 = vrot.slane %v21, %v121
  %v123 = vmul.f32 %v37, %v122
  %v124 = vmul.f32 %v41, %v122
  %v125 = vmul.f32 %v48, %v122
  %v126 = vmul.f32 %v52, %v122
  %v127 = vmul.f32 %v59, %v122
  %v128 = vmul.f32 %v63, %v122
  %v129 = vmul.f32 %v70, %v122
  %v130 = vmul.f32 %v74, %v122
  %v131 = vmul.f32 %v81, %v122
  %v132 = vmul.f32 %v85, %v122
  %v133 = vmul.f32 %v92, %v122
  %v134 = vmul.f32 %v96, %v122
  %v135 = vmul.f32 %v103, %v122
  %v136 = vmul.f32 %v107, %v122
  %v137 = vmul.f32 %v114, %v122
  %v138 = vmul.f32 %v118, %v122
  %s140 = sor.u32 256, 1
  %141 = vbcast.lane.b32.xlu0 %v34, %s140
  %v142 = vpop.permute.xlu0 %141
  %s144 = sor.u32 256, 9
  %145 = vbcast.lane.b32.xlu0 %v34, %s144
  %v146 = vpop.permute.xlu0 %145
  %s148 = sor.u32 256, 1
  %149 = vbcast.lane.b32.xlu0 %v45, %s148
  %v150 = vpop.permute.xlu0 %149
  %s152 = sor.u32 256, 9
  %153 = vbcast.lane.b32.xlu0 %v45, %s152
  %v154 = vpop.permute.xlu0 %153
  %s156 = sor.u32 256, 1
  %157 = vbcast.lane.b32.xlu0 %v56, %s156
  %v158 = vpop.permute.xlu0 %157
  %s160 = sor.u32 256, 9
  %161 = vbcast.lane.b32.xlu0 %v56, %s160
  %v162 = vpop.permute.xlu0 %161
  %s164 = sor.u32 256, 1
  %165 = vbcast.lane.b32.xlu0 %v67, %s164
  %v166 = vpop.permute.xlu0 %165
  %s168 = sor.u32 256, 9
  %169 = vbcast.lane.b32.xlu0 %v67, %s168
  %v170 = vpop.permute.xlu0 %169
  %s172 = sor.u32 256, 1
  %173 = vbcast.lane.b32.xlu0 %v78, %s172
  %v174 = vpop.permute.xlu0 %173
  %s176 = sor.u32 256, 9
  %177 = vbcast.lane.b32.xlu0 %v78, %s176
  %v178 = vpop.permute.xlu0 %177
  %s180 = sor.u32 256, 1
  %181 = vbcast.lane.b32.xlu0 %v89, %s180
  %v182 = vpop.permute.xlu0 %181
  %s184 = sor.u32 256, 9
  %185 = vbcast.lane.b32.xlu0 %v89, %s184
  %v186 = vpop.permute.xlu0 %185
  %s188 = sor.u32 256, 1
  %189 = vbcast.lane.b32.xlu0 %v100, %s188
  %v190 = vpop.permute.xlu0 %189
  %s192 = sor.u32 256, 9
  %193 = vbcast.lane.b32.xlu0 %v100, %s192
  %v194 = vpop.permute.xlu0 %193
  %s196 = sor.u32 256, 1
  %197 = vbcast.lane.b32.xlu0 %v111, %s196
  %v198 = vpop.permute.xlu0 %197
  %s200 = sor.u32 256, 9
  %201 = vbcast.lane.b32.xlu0 %v111, %s200
  %v202 = vpop.permute.xlu0 %201
  %v203 = vlaneseq
  %v204 = vshrl.u32 %v203, 7
  %v205 = vsub.s32 1, %v204
  %v206 = vrot.slane %v21, %v205
  %v207 = vmul.f32 %v142, %v206
  %v208 = vmul.f32 %v146, %v206
  %v209 = vmul.f32 %v150, %v206
  %v210 = vmul.f32 %v154, %v206
  %v211 = vmul.f32 %v158, %v206
  %v212 = vmul.f32 %v162, %v206
  %v213 = vmul.f32 %v166, %v206
  %v214 = vmul.f32 %v170, %v206
  %v215 = vmul.f32 %v174, %v206
  %v216 = vmul.f32 %v178, %v206
  %v217 = vmul.f32 %v182, %v206
  %v218 = vmul.f32 %v186, %v206
  %v219 = vmul.f32 %v190, %v206
  %v220 = vmul.f32 %v194, %v206
  %v221 = vmul.f32 %v198, %v206
  %v222 = vmul.f32 %v202, %v206
  %v223 = vadd.f32 %v123, %v207
  %v224 = vadd.f32 %v124, %v208
  %v225 = vadd.f32 %v125, %v209
  %v226 = vadd.f32 %v126, %v210
  %v227 = vadd.f32 %v127, %v211
  %v228 = vadd.f32 %v128, %v212
  %v229 = vadd.f32 %v129, %v213
  %v230 = vadd.f32 %v130, %v214
  %v231 = vadd.f32 %v131, %v215
  %v232 = vadd.f32 %v132, %v216
  %v233 = vadd.f32 %v133, %v217
  %v234 = vadd.f32 %v134, %v218
  %v235 = vadd.f32 %v135, %v219
  %v236 = vadd.f32 %v136, %v220
  %v237 = vadd.f32 %v137, %v221
  %v238 = vadd.f32 %v138, %v222
  %s240 = sor.u32 256, 2
  %241 = vbcast.lane.b32.xlu0 %v34, %s240
  %v242 = vpop.permute.xlu0 %241
  %s244 = sor.u32 256, 10
  %245 = vbcast.lane.b32.xlu0 %v34, %s244
  %v246 = vpop.permute.xlu0 %245
  %s248 = sor.u32 256, 2
  %249 = vbcast.lane.b32.xlu0 %v45, %s248
  %v250 = vpop.permute.xlu0 %249
  %s252 = sor.u32 256, 10
  %253 = vbcast.lane.b32.xlu0 %v45, %s252
  %v254 = vpop.permute.xlu0 %253
  %s256 = sor.u32 256, 2
  %257 = vbcast.lane.b32.xlu0 %v56, %s256
  %v258 = vpop.permute.xlu0 %257
  %s260 = sor.u32 256, 10
  %261 = vbcast.lane.b32.xlu0 %v56, %s260
  %v262 = vpop.permute.xlu0 %261
  %s264 = sor.u32 256, 2
  %265 = vbcast.lane.b32.xlu0 %v67, %s264
  %v266 = vpop.permute.xlu0 %265
  %s268 = sor.u32 256, 10
  %269 = vbcast.lane.b32.xlu0 %v67, %s268
  %v270 = vpop.permute.xlu0 %269
  %s272 = sor.u32 256, 2
  %273 = vbcast.lane.b32.xlu0 %v78, %s272
  %v274 = vpop.permute.xlu0 %273
  %s276 = sor.u32 256, 10
  %277 = vbcast.lane.b32.xlu0 %v78, %s276
  %v278 = vpop.permute.xlu0 %277
  %s280 = sor.u32 256, 2
  %281 = vbcast.lane.b32.xlu0 %v89, %s280
  %v282 = vpop.permute.xlu0 %281
  %s284 = sor.u32 256, 10
  %285 = vbcast.lane.b32.xlu0 %v89, %s284
  %v286 = vpop.permute.xlu0 %285
  %s288 = sor.u32 256, 2
  %289 = vbcast.lane.b32.xlu0 %v100, %s288
  %v290 = vpop.permute.xlu0 %289
  %s292 = sor.u32 256, 10
  %293 = vbcast.lane.b32.xlu0 %v100, %s292
  %v294 = vpop.permute.xlu0 %293
  %s296 = sor.u32 256, 2
  %297 = vbcast.lane.b32.xlu0 %v111, %s296
  %v298 = vpop.permute.xlu0 %297
  %s300 = sor.u32 256, 10
  %301 = vbcast.lane.b32.xlu0 %v111, %s300
  %v302 = vpop.permute.xlu0 %301
  %v303 = vlaneseq
  %v304 = vshrl.u32 %v303, 7
  %v305 = vsub.s32 2, %v304
  %v306 = vrot.slane %v21, %v305
  %v307 = vmul.f32 %v242, %v306
  %v308 = vmul.f32 %v246, %v306
  %v309 = vmul.f32 %v250, %v306
  %v310 = vmul.f32 %v254, %v306
  %v311 = vmul.f32 %v258, %v306
  %v312 = vmul.f32 %v262, %v306
  %v313 = vmul.f32 %v266, %v306
  %v314 = vmul.f32 %v270, %v306
  %v315 = vmul.f32 %v274, %v306
  %v316 = vmul.f32 %v278, %v306
  %v317 = vmul.f32 %v282, %v306
  %v318 = vmul.f32 %v286, %v306
  %v319 = vmul.f32 %v290, %v306
  %v320 = vmul.f32 %v294, %v306
  %v321 = vmul.f32 %v298, %v306
  %v322 = vmul.f32 %v302, %v306
  %v323 = vadd.f32 %v223, %v307
  %v324 = vadd.f32 %v224, %v308
  %v325 = vadd.f32 %v225, %v309
  %v326 = vadd.f32 %v226, %v310
  %v327 = vadd.f32 %v227, %v311
  %v328 = vadd.f32 %v228, %v312
  %v329 = vadd.f32 %v229, %v313
  %v330 = vadd.f32 %v230, %v314
  %v331 = vadd.f32 %v231, %v315
  %v332 = vadd.f32 %v232, %v316
  %v333 = vadd.f32 %v233, %v317
  %v334 = vadd.f32 %v234, %v318
  %v335 = vadd.f32 %v235, %v319
  %v336 = vadd.f32 %v236, %v320
  %v337 = vadd.f32 %v237, %v321
  %v338 = vadd.f32 %v238, %v322
  %s340 = sor.u32 256, 3
  %341 = vbcast.lane.b32.xlu0 %v34, %s340
  %v342 = vpop.permute.xlu0 %341
  %s344 = sor.u32 256, 11
  %345 = vbcast.lane.b32.xlu0 %v34, %s344
  %v346 = vpop.permute.xlu0 %345
  %s348 = sor.u32 256, 3
  %349 = vbcast.lane.b32.xlu0 %v45, %s348
  %v350 = vpop.permute.xlu0 %349
  %s352 = sor.u32 256, 11
  %353 = vbcast.lane.b32.xlu0 %v45, %s352
  %v354 = vpop.permute.xlu0 %353
  %s356 = sor.u32 256, 3
  %357 = vbcast.lane.b32.xlu0 %v56, %s356
  %v358 = vpop.permute.xlu0 %357
  %s360 = sor.u32 256, 11
  %361 = vbcast.lane.b32.xlu0 %v56, %s360
  %v362 = vpop.permute.xlu0 %361
  %s364 = sor.u32 256, 3
  %365 = vbcast.lane.b32.xlu0 %v67, %s364
  %v366 = vpop.permute.xlu0 %365
  %s368 = sor.u32 256, 11
  %369 = vbcast.lane.b32.xlu0 %v67, %s368
  %v370 = vpop.permute.xlu0 %369
  %s372 = sor.u32 256, 3
  %373 = vbcast.lane.b32.xlu0 %v78, %s372
  %v374 = vpop.permute.xlu0 %373
  %s376 = sor.u32 256, 11
  %377 = vbcast.lane.b32.xlu0 %v78, %s376
  %v378 = vpop.permute.xlu0 %377
  %s380 = sor.u32 256, 3
  %381 = vbcast.lane.b32.xlu0 %v89, %s380
  %v382 = vpop.permute.xlu0 %381
  %s384 = sor.u32 256, 11
  %385 = vbcast.lane.b32.xlu0 %v89, %s384
  %v386 = vpop.permute.xlu0 %385
  %s388 = sor.u32 256, 3
  %389 = vbcast.lane.b32.xlu0 %v100, %s388
  %v390 = vpop.permute.xlu0 %389
  %s392 = sor.u32 256, 11
  %393 = vbcast.lane.b32.xlu0 %v100, %s392
  %v394 = vpop.permute.xlu0 %393
  %s396 = sor.u32 256, 3
  %397 = vbcast.lane.b32.xlu0 %v111, %s396
  %v398 = vpop.permute.xlu0 %397
  %s400 = sor.u32 256, 11
  %401 = vbcast.lane.b32.xlu0 %v111, %s400
  %v402 = vpop.permute.xlu0 %401
  %v403 = vlaneseq
  %v404 = vshrl.u32 %v403, 7
  %v405 = vsub.s32 3, %v404
  %v406 = vrot.slane %v21, %v405
  %v407 = vmul.f32 %v342, %v406
  %v408 = vmul.f32 %v346, %v406
  %v409 = vmul.f32 %v350, %v406
  %v410 = vmul.f32 %v354, %v406
  %v411 = vmul.f32 %v358, %v406
  %v412 = vmul.f32 %v362, %v406
  %v413 = vmul.f32 %v366, %v406
  %v414 = vmul.f32 %v370, %v406
  %v415 = vmul.f32 %v374, %v406
  %v416 = vmul.f32 %v378, %v406
  %v417 = vmul.f32 %v382, %v406
  %v418 = vmul.f32 %v386, %v406
  %v419 = vmul.f32 %v390, %v406
  %v420 = vmul.f32 %v394, %v406
  %v421 = vmul.f32 %v398, %v406
  %v422 = vmul.f32 %v402, %v406
  %v423 = vadd.f32 %v323, %v407
  %v424 = vadd.f32 %v324, %v408
  %v425 = vadd.f32 %v325, %v409
  %v426 = vadd.f32 %v326, %v410
  %v427 = vadd.f32 %v327, %v411
  %v428 = vadd.f32 %v328, %v412
  %v429 = vadd.f32 %v329, %v413
  %v430 = vadd.f32 %v330, %v414
  %v431 = vadd.f32 %v331, %v415
  %v432 = vadd.f32 %v332, %v416
  %v433 = vadd.f32 %v333, %v417
  %v434 = vadd.f32 %v334, %v418
  %v435 = vadd.f32 %v335, %v419
  %v436 = vadd.f32 %v336, %v420
  %v437 = vadd.f32 %v337, %v421
  %v438 = vadd.f32 %v338, %v422
  %s440 = sor.u32 256, 4
  %441 = vbcast.lane.b32.xlu0 %v34, %s440
  %v442 = vpop.permute.xlu0 %441
  %s444 = sor.u32 256, 12
  %445 = vbcast.lane.b32.xlu0 %v34, %s444
  %v446 = vpop.permute.xlu0 %445
  %s448 = sor.u32 256, 4
  %449 = vbcast.lane.b32.xlu0 %v45, %s448
  %v450 = vpop.permute.xlu0 %449
  %s452 = sor.u32 256, 12
  %453 = vbcast.lane.b32.xlu0 %v45, %s452
  %v454 = vpop.permute.xlu0 %453
  %s456 = sor.u32 256, 4
  %457 = vbcast.lane.b32.xlu0 %v56, %s456
  %v458 = vpop.permute.xlu0 %457
  %s460 = sor.u32 256, 12
  %461 = vbcast.lane.b32.xlu0 %v56, %s460
  %v462 = vpop.permute.xlu0 %461
  %s464 = sor.u32 256, 4
  %465 = vbcast.lane.b32.xlu0 %v67, %s464
  %v466 = vpop.permute.xlu0 %465
  %s468 = sor.u32 256, 12
  %469 = vbcast.lane.b32.xlu0 %v67, %s468
  %v470 = vpop.permute.xlu0 %469
  %s472 = sor.u32 256, 4
  %473 = vbcast.lane.b32.xlu0 %v78, %s472
  %v474 = vpop.permute.xlu0 %473
  %s476 = sor.u32 256, 12
  %477 = vbcast.lane.b32.xlu0 %v78, %s476
  %v478 = vpop.permute.xlu0 %477
  %s480 = sor.u32 256, 4
  %481 = vbcast.lane.b32.xlu0 %v89, %s480
  %v482 = vpop.permute.xlu0 %481
  %s484 = sor.u32 256, 12
  %485 = vbcast.lane.b32.xlu0 %v89, %s484
  %v486 = vpop.permute.xlu0 %485
  %s488 = sor.u32 256, 4
  %489 = vbcast.lane.b32.xlu0 %v100, %s488
  %v490 = vpop.permute.xlu0 %489
  %s492 = sor.u32 256, 12
  %493 = vbcast.lane.b32.xlu0 %v100, %s492
  %v494 = vpop.permute.xlu0 %493
  %s496 = sor.u32 256, 4
  %497 = vbcast.lane.b32.xlu0 %v111, %s496
  %v498 = vpop.permute.xlu0 %497
  %s500 = sor.u32 256, 12
  %501 = vbcast.lane.b32.xlu0 %v111, %s500
  %v502 = vpop.permute.xlu0 %501
  %v503 = vlaneseq
  %v504 = vshrl.u32 %v503, 7
  %v505 = vsub.s32 4, %v504
  %v506 = vrot.slane %v21, %v505
  %v507 = vmul.f32 %v442, %v506
  %v508 = vmul.f32 %v446, %v506
  %v509 = vmul.f32 %v450, %v506
  %v510 = vmul.f32 %v454, %v506
  %v511 = vmul.f32 %v458, %v506
  %v512 = vmul.f32 %v462, %v506
  %v513 = vmul.f32 %v466, %v506
  %v514 = vmul.f32 %v470, %v506
  %v515 = vmul.f32 %v474, %v506
  %v516 = vmul.f32 %v478, %v506
  %v517 = vmul.f32 %v482, %v506
  %v518 = vmul.f32 %v486, %v506
  %v519 = vmul.f32 %v490, %v506
  %v520 = vmul.f32 %v494, %v506
  %v521 = vmul.f32 %v498, %v506
  %v522 = vmul.f32 %v502, %v506
  %v523 = vadd.f32 %v423, %v507
  %v524 = vadd.f32 %v424, %v508
  %v525 = vadd.f32 %v425, %v509
  %v526 = vadd.f32 %v426, %v510
  %v527 = vadd.f32 %v427, %v511
  %v528 = vadd.f32 %v428, %v512
  %v529 = vadd.f32 %v429, %v513
  %v530 = vadd.f32 %v430, %v514
  %v531 = vadd.f32 %v431, %v515
  %v532 = vadd.f32 %v432, %v516
  %v533 = vadd.f32 %v433, %v517
  %v534 = vadd.f32 %v434, %v518
  %v535 = vadd.f32 %v435, %v519
  %v536 = vadd.f32 %v436, %v520
  %v537 = vadd.f32 %v437, %v521
  %v538 = vadd.f32 %v438, %v522
  %v539 = vlaneseq
  %v540 = vshrl.u32 %v539, 7
  %v541 = vsub.s32 5, %v540
  %v542 = vrot.slane %v21, %v541
  %v543 = vmul.f32 %v523, %v542
  %v544 = vmul.f32 %v524, %v542
  %v545 = vmul.f32 %v525, %v542
  %v546 = vmul.f32 %v526, %v542
  %v547 = vmul.f32 %v527, %v542
  %v548 = vmul.f32 %v528, %v542
  %v549 = vmul.f32 %v529, %v542
  %v550 = vmul.f32 %v530, %v542
  %v551 = vmul.f32 %v531, %v542
  %v552 = vmul.f32 %v532, %v542
  %v553 = vmul.f32 %v533, %v542
  %v554 = vmul.f32 %v534, %v542
  %v555 = vmul.f32 %v535, %v542
  %v556 = vmul.f32 %v536, %v542
  %v557 = vmul.f32 %v537, %v542
  %v558 = vmul.f32 %v538, %v542
  %v559 = vlaneseq
  %v560 = vshrl.u32 %v559, 7
  %v561 = vsub.s32 6, %v560
  %v562 = vrot.slane %v21, %v561
  %v563 = vadd.f32 %v543, %v562
  %v564 = vadd.f32 %v544, %v562
  %v565 = vadd.f32 %v545, %v562
  %v566 = vadd.f32 %v546, %v562
  %v567 = vadd.f32 %v547, %v562
  %v568 = vadd.f32 %v548, %v562
  %v569 = vadd.f32 %v549, %v562
  %v570 = vadd.f32 %v550, %v562
  %v571 = vadd.f32 %v551, %v562
  %v572 = vadd.f32 %v552, %v562
  %v573 = vadd.f32 %v553, %v562
  %v574 = vadd.f32 %v554, %v562
  %v575 = vadd.f32 %v555, %v562
  %v576 = vadd.f32 %v556, %v562
  %v577 = vadd.f32 %v557, %v562
  %v578 = vadd.f32 %v558, %v562
  %v579 = vmax.f32 %v563, 0.0
  %v580 = vmax.f32 %v564, 0.0
  %v581 = vmax.f32 %v565, 0.0
  %v582 = vmax.f32 %v566, 0.0
  %v583 = vmax.f32 %v567, 0.0
  %v584 = vmax.f32 %v568, 0.0
  %v585 = vmax.f32 %v569, 0.0
  %v586 = vmax.f32 %v570, 0.0
  %v587 = vmax.f32 %v571, 0.0
  %v588 = vmax.f32 %v572, 0.0
  %v589 = vmax.f32 %v573, 0.0
  %v590 = vmax.f32 %v574, 0.0
  %v591 = vmax.f32 %v575, 0.0
  %v592 = vmax.f32 %v576, 0.0
  %v593 = vmax.f32 %v577, 0.0
  %v594 = vmax.f32 %v578, 0.0
  %v595 = vlaneseq
  %v596 = vshrl.u32 %v595, 7
  %v597 = vadd.s32 %v596, 8
  %v598 = vadd.s32 %v596, 16
  %v599 = vadd.s32 %v596, 24
  %v600 = vadd.s32 %v596, 32
  %v601 = vadd.s32 %v596, 40
  %v602 = vadd.s32 %v596, 48
  %v603 = vadd.s32 %v596, 56
  %v604 = vadd.s32 %v596, 64
  %v605 = vadd.s32 %v596, 72
  %v606 = vadd.s32 %v596, 80
  %v607 = vadd.s32 %v596, 88
  %v608 = vadd.s32 %v596, 96
  %v609 = vadd.s32 %v596, 104
  %v610 = vadd.s32 %v596, 112
  %v611 = vadd.s32 %v596, 120
  %vm612 = vcmp.lt.s32.totalorder %v596, 0
  %v613 = vsub.s32 0, %v596
  %v614 = vsel %vm612, %v613, %v596
  %v615 = vshrl.u32 %v614, 4
  %v616 = vand.u32 %v614, 15
  %v617 = vsub.s32 0, %v616
  %v618 = vsel %vm612, %v617, %v616
  %vm619 = vcmp.lt.s32.totalorder %v597, 0
  %v620 = vsub.s32 0, %v597
  %v621 = vsel %vm619, %v620, %v597
  %v622 = vshrl.u32 %v621, 4
  %v623 = vand.u32 %v621, 15
  %v624 = vsub.s32 0, %v623
  %v625 = vsel %vm619, %v624, %v623
  %vm626 = vcmp.lt.s32.totalorder %v598, 0
  %v627 = vsub.s32 0, %v598
  %v628 = vsel %vm626, %v627, %v598
  %v629 = vshrl.u32 %v628, 4
  %v630 = vand.u32 %v628, 15
  %v631 = vsub.s32 0, %v630
  %v632 = vsel %vm626, %v631, %v630
  %vm633 = vcmp.lt.s32.totalorder %v599, 0
  %v634 = vsub.s32 0, %v599
  %v635 = vsel %vm633, %v634, %v599
  %v636 = vshrl.u32 %v635, 4
  %v637 = vand.u32 %v635, 15
  %v638 = vsub.s32 0, %v637
  %v639 = vsel %vm633, %v638, %v637
  %vm640 = vcmp.lt.s32.totalorder %v600, 0
  %v641 = vsub.s32 0, %v600
  %v642 = vsel %vm640, %v641, %v600
  %v643 = vshrl.u32 %v642, 4
  %v644 = vand.u32 %v642, 15
  %v645 = vsub.s32 0, %v644
  %v646 = vsel %vm640, %v645, %v644
  %vm647 = vcmp.lt.s32.totalorder %v601, 0
  %v648 = vsub.s32 0, %v601
  %v649 = vsel %vm647, %v648, %v601
  %v650 = vshrl.u32 %v649, 4
  %v651 = vand.u32 %v649, 15
  %v652 = vsub.s32 0, %v651
  %v653 = vsel %vm647, %v652, %v651
  %vm654 = vcmp.lt.s32.totalorder %v602, 0
  %v655 = vsub.s32 0, %v602
  %v656 = vsel %vm654, %v655, %v602
  %v657 = vshrl.u32 %v656, 4
  %v658 = vand.u32 %v656, 15
  %v659 = vsub.s32 0, %v658
  %v660 = vsel %vm654, %v659, %v658
  %vm661 = vcmp.lt.s32.totalorder %v603, 0
  %v662 = vsub.s32 0, %v603
  %v663 = vsel %vm661, %v662, %v603
  %v664 = vshrl.u32 %v663, 4
  %v665 = vand.u32 %v663, 15
  %v666 = vsub.s32 0, %v665
  %v667 = vsel %vm661, %v666, %v665
  %vm668 = vcmp.lt.s32.totalorder %v604, 0
  %v669 = vsub.s32 0, %v604
  %v670 = vsel %vm668, %v669, %v604
  %v671 = vshrl.u32 %v670, 4
  %v672 = vand.u32 %v670, 15
  %v673 = vsub.s32 0, %v672
  %v674 = vsel %vm668, %v673, %v672
  %vm675 = vcmp.lt.s32.totalorder %v605, 0
  %v676 = vsub.s32 0, %v605
  %v677 = vsel %vm675, %v676, %v605
  %v678 = vshrl.u32 %v677, 4
  %v679 = vand.u32 %v677, 15
  %v680 = vsub.s32 0, %v679
  %v681 = vsel %vm675, %v680, %v679
  %vm682 = vcmp.lt.s32.totalorder %v606, 0
  %v683 = vsub.s32 0, %v606
  %v684 = vsel %vm682, %v683, %v606
  %v685 = vshrl.u32 %v684, 4
  %v686 = vand.u32 %v684, 15
  %v687 = vsub.s32 0, %v686
  %v688 = vsel %vm682, %v687, %v686
  %vm689 = vcmp.lt.s32.totalorder %v607, 0
  %v690 = vsub.s32 0, %v607
  %v691 = vsel %vm689, %v690, %v607
  %v692 = vshrl.u32 %v691, 4
  %v693 = vand.u32 %v691, 15
  %v694 = vsub.s32 0, %v693
  %v695 = vsel %vm689, %v694, %v693
  %vm696 = vcmp.lt.s32.totalorder %v608, 0
  %v697 = vsub.s32 0, %v608
  %v698 = vsel %vm696, %v697, %v608
  %v699 = vshrl.u32 %v698, 4
  %v700 = vand.u32 %v698, 15
  %v701 = vsub.s32 0, %v700
  %v702 = vsel %vm696, %v701, %v700
  %vm703 = vcmp.lt.s32.totalorder %v609, 0
  %v704 = vsub.s32 0, %v609
  %v705 = vsel %vm703, %v704, %v609
  %v706 = vshrl.u32 %v705, 4
  %v707 = vand.u32 %v705, 15
  %v708 = vsub.s32 0, %v707
  %v709 = vsel %vm703, %v708, %v707
  %vm710 = vcmp.lt.s32.totalorder %v610, 0
  %v711 = vsub.s32 0, %v610
  %v712 = vsel %vm710, %v711, %v610
  %v713 = vshrl.u32 %v712, 4
  %v714 = vand.u32 %v712, 15
  %v715 = vsub.s32 0, %v714
  %v716 = vsel %vm710, %v715, %v714
  %vm717 = vcmp.lt.s32.totalorder %v611, 0
  %v718 = vsub.s32 0, %v611
  %v719 = vsel %vm717, %v718, %v611
  %v720 = vshrl.u32 %v719, 4
  %v721 = vand.u32 %v719, 15
  %v722 = vsub.s32 0, %v721
  %v723 = vsel %vm717, %v722, %v721
  %vm724 = vcmp.ne.s32.totalorder %v618, 0
  %vm725 = vcmp.ne.s32.totalorder %v625, 0
  %vm726 = vcmp.ne.s32.totalorder %v632, 0
  %vm727 = vcmp.ne.s32.totalorder %v639, 0
  %vm728 = vcmp.ne.s32.totalorder %v646, 0
  %vm729 = vcmp.ne.s32.totalorder %v653, 0
  %vm730 = vcmp.ne.s32.totalorder %v660, 0
  %vm731 = vcmp.ne.s32.totalorder %v667, 0
  %vm732 = vcmp.ne.s32.totalorder %v674, 0
  %vm733 = vcmp.ne.s32.totalorder %v681, 0
  %vm734 = vcmp.ne.s32.totalorder %v688, 0
  %vm735 = vcmp.ne.s32.totalorder %v695, 0
  %vm736 = vcmp.ne.s32.totalorder %v702, 0
  %vm737 = vcmp.ne.s32.totalorder %v709, 0
  %vm738 = vcmp.ne.s32.totalorder %v716, 0
  %vm739 = vcmp.ne.s32.totalorder %v723, 0
  %vm740 = vcmp.lt.s32.totalorder %v618, 0
  %vm741 = vcmp.lt.s32.totalorder %v625, 0
  %vm742 = vcmp.lt.s32.totalorder %v632, 0
  %vm743 = vcmp.lt.s32.totalorder %v639, 0
  %vm744 = vcmp.lt.s32.totalorder %v646, 0
  %vm745 = vcmp.lt.s32.totalorder %v653, 0
  %vm746 = vcmp.lt.s32.totalorder %v660, 0
  %vm747 = vcmp.lt.s32.totalorder %v667, 0
  %vm748 = vcmp.lt.s32.totalorder %v674, 0
  %vm749 = vcmp.lt.s32.totalorder %v681, 0
  %vm750 = vcmp.lt.s32.totalorder %v688, 0
  %vm751 = vcmp.lt.s32.totalorder %v695, 0
  %vm752 = vcmp.lt.s32.totalorder %v702, 0
  %vm753 = vcmp.lt.s32.totalorder %v709, 0
  %vm754 = vcmp.lt.s32.totalorder %v716, 0
  %vm755 = vcmp.lt.s32.totalorder %v723, 0
  %vm756 = vmand %vm740, %vm724
  %vm757 = vmand %vm741, %vm725
  %vm758 = vmand %vm742, %vm726
  %vm759 = vmand %vm743, %vm727
  %vm760 = vmand %vm744, %vm728
  %vm761 = vmand %vm745, %vm729
  %vm762 = vmand %vm746, %vm730
  %vm763 = vmand %vm747, %vm731
  %vm764 = vmand %vm748, %vm732
  %vm765 = vmand %vm749, %vm733
  %vm766 = vmand %vm750, %vm734
  %vm767 = vmand %vm751, %vm735
  %vm768 = vmand %vm752, %vm736
  %vm769 = vmand %vm753, %vm737
  %vm770 = vmand %vm754, %vm738
  %vm771 = vmand %vm755, %vm739
  %v772 = vadd.s32 %v618, 16
  %v773 = vadd.s32 %v625, 16
  %v774 = vadd.s32 %v632, 16
  %v775 = vadd.s32 %v639, 16
  %v776 = vadd.s32 %v646, 16
  %v777 = vadd.s32 %v653, 16
  %v778 = vadd.s32 %v660, 16
  %v779 = vadd.s32 %v667, 16
  %v780 = vadd.s32 %v674, 16
  %v781 = vadd.s32 %v681, 16
  %v782 = vadd.s32 %v688, 16
  %v783 = vadd.s32 %v695, 16
  %v784 = vadd.s32 %v702, 16
  %v785 = vadd.s32 %v709, 16
  %v786 = vadd.s32 %v716, 16
  %v787 = vadd.s32 %v723, 16
  %v788 = vsel %vm756, %v772, %v618
  %v789 = vsel %vm757, %v773, %v625
  %v790 = vsel %vm758, %v774, %v632
  %v791 = vsel %vm759, %v775, %v639
  %v792 = vsel %vm760, %v776, %v646
  %v793 = vsel %vm761, %v777, %v653
  %v794 = vsel %vm762, %v778, %v660
  %v795 = vsel %vm763, %v779, %v667
  %v796 = vsel %vm764, %v780, %v674
  %v797 = vsel %vm765, %v781, %v681
  %v798 = vsel %vm766, %v782, %v688
  %v799 = vsel %vm767, %v783, %v695
  %v800 = vsel %vm768, %v784, %v702
  %v801 = vsel %vm769, %v785, %v709
  %v802 = vsel %vm770, %v786, %v716
  %v803 = vsel %vm771, %v787, %v723
  %v804 = vrot.slane %v579, 6
  %v805 = vrot.slane %v580, 6
  %v806 = vrot.slane %v581, 6
  %v807 = vrot.slane %v582, 6
  %v808 = vrot.slane %v583, 6
  %v809 = vrot.slane %v584, 6
  %v810 = vrot.slane %v585, 6
  %v811 = vrot.slane %v586, 6
  %v812 = vrot.slane %v587, 6
  %v813 = vrot.slane %v588, 6
  %v814 = vrot.slane %v589, 6
  %v815 = vrot.slane %v590, 6
  %v816 = vrot.slane %v591, 6
  %v817 = vrot.slane %v592, 6
  %v818 = vrot.slane %v593, 6
  %v819 = vrot.slane %v594, 6
  %vm820 = vcmp.lt.s32.totalorder %v596, 2
  %v821 = vsel %vm820, %v818, %v819
  %v822 = vsel %vm820, %v817, %v818
  %v823 = vsel %vm820, %v816, %v817
  %v824 = vsel %vm820, %v815, %v816
  %v825 = vsel %vm820, %v814, %v815
  %v826 = vsel %vm820, %v813, %v814
  %v827 = vsel %vm820, %v812, %v813
  %v828 = vsel %vm820, %v811, %v812
  %v829 = vsel %vm820, %v810, %v811
  %v830 = vsel %vm820, %v809, %v810
  %v831 = vsel %vm820, %v808, %v809
  %v832 = vsel %vm820, %v807, %v808
  %v833 = vsel %vm820, %v806, %v807
  %v834 = vsel %vm820, %v805, %v806
  %v835 = vsel %vm820, %v804, %v805
  %v836 = vsel %vm820, %v819, %v804
  %vm837 = vcmp.ge.s32.totalorder %v788, 2
  %vm838 = vcmp.ge.s32.totalorder %v789, 2
  %vm839 = vcmp.ge.s32.totalorder %v790, 2
  %vm840 = vcmp.ge.s32.totalorder %v791, 2
  %vm841 = vcmp.ge.s32.totalorder %v792, 2
  %vm842 = vcmp.ge.s32.totalorder %v793, 2
  %vm843 = vcmp.ge.s32.totalorder %v794, 2
  %vm844 = vcmp.ge.s32.totalorder %v795, 2
  %vm845 = vcmp.ge.s32.totalorder %v796, 2
  %vm846 = vcmp.ge.s32.totalorder %v797, 2
  %vm847 = vcmp.ge.s32.totalorder %v798, 2
  %vm848 = vcmp.ge.s32.totalorder %v799, 2
  %vm849 = vcmp.ge.s32.totalorder %v800, 2
  %vm850 = vcmp.ge.s32.totalorder %v801, 2
  %vm851 = vcmp.ge.s32.totalorder %v802, 2
  %vm852 = vcmp.ge.s32.totalorder %v803, 2
  %vm853 = vcmp.lt.s32.totalorder %v788, 18
  %vm854 = vcmp.lt.s32.totalorder %v789, 18
  %vm855 = vcmp.lt.s32.totalorder %v790, 18
  %vm856 = vcmp.lt.s32.totalorder %v791, 18
  %vm857 = vcmp.lt.s32.totalorder %v792, 18
  %vm858 = vcmp.lt.s32.totalorder %v793, 18
  %vm859 = vcmp.lt.s32.totalorder %v794, 18
  %vm860 = vcmp.lt.s32.totalorder %v795, 18
  %vm861 = vcmp.lt.s32.totalorder %v796, 18
  %vm862 = vcmp.lt.s32.totalorder %v797, 18
  %vm863 = vcmp.lt.s32.totalorder %v798, 18
  %vm864 = vcmp.lt.s32.totalorder %v799, 18
  %vm865 = vcmp.lt.s32.totalorder %v800, 18
  %vm866 = vcmp.lt.s32.totalorder %v801, 18
  %vm867 = vcmp.lt.s32.totalorder %v802, 18
  %vm868 = vcmp.lt.s32.totalorder %v803, 18
  %vm869 = vmand %vm837, %vm853
  %vm870 = vmand %vm838, %vm854
  %vm871 = vmand %vm839, %vm855
  %vm872 = vmand %vm840, %vm856
  %vm873 = vmand %vm841, %vm857
  %vm874 = vmand %vm842, %vm858
  %vm875 = vmand %vm843, %vm859
  %vm876 = vmand %vm844, %vm860
  %vm877 = vmand %vm845, %vm861
  %vm878 = vmand %vm846, %vm862
  %vm879 = vmand %vm847, %vm863
  %vm880 = vmand %vm848, %vm864
  %vm881 = vmand %vm849, %vm865
  %vm882 = vmand %vm850, %vm866
  %vm883 = vmand %vm851, %vm867
  %vm884 = vmand %vm852, %vm868
  %v885 = vsel %vm869, 1, 0
  %v886 = vsel %vm870, 1, 0
  %v887 = vsel %vm871, 1, 0
  %v888 = vsel %vm872, 1, 0
  %v889 = vsel %vm873, 1, 0
  %v890 = vsel %vm874, 1, 0
  %v891 = vsel %vm875, 1, 0
  %v892 = vsel %vm876, 1, 0
  %v893 = vsel %vm877, 1, 0
  %v894 = vsel %vm878, 1, 0
  %v895 = vsel %vm879, 1, 0
  %v896 = vsel %vm880, 1, 0
  %v897 = vsel %vm881, 1, 0
  %v898 = vsel %vm882, 1, 0
  %v899 = vsel %vm883, 1, 0
  %v900 = vsel %vm884, 1, 0
  %vm901 = vcmp.eq.s32.totalorder %v885, 1
  %vm902 = vcmp.eq.s32.totalorder %v886, 1
  %vm903 = vcmp.eq.s32.totalorder %v887, 1
  %vm904 = vcmp.eq.s32.totalorder %v888, 1
  %vm905 = vcmp.eq.s32.totalorder %v889, 1
  %vm906 = vcmp.eq.s32.totalorder %v890, 1
  %vm907 = vcmp.eq.s32.totalorder %v891, 1
  %vm908 = vcmp.eq.s32.totalorder %v892, 1
  %vm909 = vcmp.eq.s32.totalorder %v893, 1
  %vm910 = vcmp.eq.s32.totalorder %v894, 1
  %vm911 = vcmp.eq.s32.totalorder %v895, 1
  %vm912 = vcmp.eq.s32.totalorder %v896, 1
  %vm913 = vcmp.eq.s32.totalorder %v897, 1
  %vm914 = vcmp.eq.s32.totalorder %v898, 1
  %vm915 = vcmp.eq.s32.totalorder %v899, 1
  %vm916 = vcmp.eq.s32.totalorder %v900, 1
  %v917 = vsel %vm901, %v836, 0.0
  %v918 = vsel %vm902, %v835, 0.0
  %v919 = vsel %vm903, %v834, 0.0
  %v920 = vsel %vm904, %v833, 0.0
  %v921 = vsel %vm905, %v832, 0.0
  %v922 = vsel %vm906, %v831, 0.0
  %v923 = vsel %vm907, %v830, 0.0
  %v924 = vsel %vm908, %v829, 0.0
  %v925 = vsel %vm909, %v828, 0.0
  %v926 = vsel %vm910, %v827, 0.0
  %v927 = vsel %vm911, %v826, 0.0
  %v928 = vsel %vm912, %v825, 0.0
  %v929 = vsel %vm913, %v824, 0.0
  %v930 = vsel %vm914, %v823, 0.0
  %v931 = vsel %vm915, %v822, 0.0
  %v932 = vsel %vm916, %v821, 0.0
  %v933 = vrot.slane %v579, 7
  %v934 = vrot.slane %v580, 7
  %v935 = vrot.slane %v581, 7
  %v936 = vrot.slane %v582, 7
  %v937 = vrot.slane %v583, 7
  %v938 = vrot.slane %v584, 7
  %v939 = vrot.slane %v585, 7
  %v940 = vrot.slane %v586, 7
  %v941 = vrot.slane %v587, 7
  %v942 = vrot.slane %v588, 7
  %v943 = vrot.slane %v589, 7
  %v944 = vrot.slane %v590, 7
  %v945 = vrot.slane %v591, 7
  %v946 = vrot.slane %v592, 7
  %v947 = vrot.slane %v593, 7
  %v948 = vrot.slane %v594, 7
  %vm949 = vcmp.lt.s32.totalorder %v596, 1
  %v950 = vsel %vm949, %v947, %v948
  %v951 = vsel %vm949, %v946, %v947
  %v952 = vsel %vm949, %v945, %v946
  %v953 = vsel %vm949, %v944, %v945
  %v954 = vsel %vm949, %v943, %v944
  %v955 = vsel %vm949, %v942, %v943
  %v956 = vsel %vm949, %v941, %v942
  %v957 = vsel %vm949, %v940, %v941
  %v958 = vsel %vm949, %v939, %v940
  %v959 = vsel %vm949, %v938, %v939
  %v960 = vsel %vm949, %v937, %v938
  %v961 = vsel %vm949, %v936, %v937
  %v962 = vsel %vm949, %v935, %v936
  %v963 = vsel %vm949, %v934, %v935
  %v964 = vsel %vm949, %v933, %v934
  %v965 = vsel %vm949, %v948, %v933
  %vm966 = vcmp.ge.s32.totalorder %v788, 1
  %vm967 = vcmp.ge.s32.totalorder %v789, 1
  %vm968 = vcmp.ge.s32.totalorder %v790, 1
  %vm969 = vcmp.ge.s32.totalorder %v791, 1
  %vm970 = vcmp.ge.s32.totalorder %v792, 1
  %vm971 = vcmp.ge.s32.totalorder %v793, 1
  %vm972 = vcmp.ge.s32.totalorder %v794, 1
  %vm973 = vcmp.ge.s32.totalorder %v795, 1
  %vm974 = vcmp.ge.s32.totalorder %v796, 1
  %vm975 = vcmp.ge.s32.totalorder %v797, 1
  %vm976 = vcmp.ge.s32.totalorder %v798, 1
  %vm977 = vcmp.ge.s32.totalorder %v799, 1
  %vm978 = vcmp.ge.s32.totalorder %v800, 1
  %vm979 = vcmp.ge.s32.totalorder %v801, 1
  %vm980 = vcmp.ge.s32.totalorder %v802, 1
  %vm981 = vcmp.ge.s32.totalorder %v803, 1
  %vm982 = vcmp.lt.s32.totalorder %v788, 17
  %vm983 = vcmp.lt.s32.totalorder %v789, 17
  %vm984 = vcmp.lt.s32.totalorder %v790, 17
  %vm985 = vcmp.lt.s32.totalorder %v791, 17
  %vm986 = vcmp.lt.s32.totalorder %v792, 17
  %vm987 = vcmp.lt.s32.totalorder %v793, 17
  %vm988 = vcmp.lt.s32.totalorder %v794, 17
  %vm989 = vcmp.lt.s32.totalorder %v795, 17
  %vm990 = vcmp.lt.s32.totalorder %v796, 17
  %vm991 = vcmp.lt.s32.totalorder %v797, 17
  %vm992 = vcmp.lt.s32.totalorder %v798, 17
  %vm993 = vcmp.lt.s32.totalorder %v799, 17
  %vm994 = vcmp.lt.s32.totalorder %v800, 17
  %vm995 = vcmp.lt.s32.totalorder %v801, 17
  %vm996 = vcmp.lt.s32.totalorder %v802, 17
  %vm997 = vcmp.lt.s32.totalorder %v803, 17
  %vm998 = vmand %vm966, %vm982
  %vm999 = vmand %vm967, %vm983
  %vm1000 = vmand %vm968, %vm984
  %vm1001 = vmand %vm969, %vm985
  %vm1002 = vmand %vm970, %vm986
  %vm1003 = vmand %vm971, %vm987
  %vm1004 = vmand %vm972, %vm988
  %vm1005 = vmand %vm973, %vm989
  %vm1006 = vmand %vm974, %vm990
  %vm1007 = vmand %vm975, %vm991
  %vm1008 = vmand %vm976, %vm992
  %vm1009 = vmand %vm977, %vm993
  %vm1010 = vmand %vm978, %vm994
  %vm1011 = vmand %vm979, %vm995
  %vm1012 = vmand %vm980, %vm996
  %vm1013 = vmand %vm981, %vm997
  %v1014 = vsel %vm998, 1, 0
  %v1015 = vsel %vm999, 1, 0
  %v1016 = vsel %vm1000, 1, 0
  %v1017 = vsel %vm1001, 1, 0
  %v1018 = vsel %vm1002, 1, 0
  %v1019 = vsel %vm1003, 1, 0
  %v1020 = vsel %vm1004, 1, 0
  %v1021 = vsel %vm1005, 1, 0
  %v1022 = vsel %vm1006, 1, 0
  %v1023 = vsel %vm1007, 1, 0
  %v1024 = vsel %vm1008, 1, 0
  %v1025 = vsel %vm1009, 1, 0
  %v1026 = vsel %vm1010, 1, 0
  %v1027 = vsel %vm1011, 1, 0
  %v1028 = vsel %vm1012, 1, 0
  %v1029 = vsel %vm1013, 1, 0
  %vm1030 = vcmp.eq.s32.totalorder %v1014, 1
  %vm1031 = vcmp.eq.s32.totalorder %v1015, 1
  %vm1032 = vcmp.eq.s32.totalorder %v1016, 1
  %vm1033 = vcmp.eq.s32.totalorder %v1017, 1
  %vm1034 = vcmp.eq.s32.totalorder %v1018, 1
  %vm1035 = vcmp.eq.s32.totalorder %v1019, 1
  %vm1036 = vcmp.eq.s32.totalorder %v1020, 1
  %vm1037 = vcmp.eq.s32.totalorder %v1021, 1
  %vm1038 = vcmp.eq.s32.totalorder %v1022, 1
  %vm1039 = vcmp.eq.s32.totalorder %v1023, 1
  %vm1040 = vcmp.eq.s32.totalorder %v1024, 1
  %vm1041 = vcmp.eq.s32.totalorder %v1025, 1
  %vm1042 = vcmp.eq.s32.totalorder %v1026, 1
  %vm1043 = vcmp.eq.s32.totalorder %v1027, 1
  %vm1044 = vcmp.eq.s32.totalorder %v1028, 1
  %vm1045 = vcmp.eq.s32.totalorder %v1029, 1
  %v1046 = vsel %vm1030, %v965, 0.0
  %v1047 = vsel %vm1031, %v964, 0.0
  %v1048 = vsel %vm1032, %v963, 0.0
  %v1049 = vsel %vm1033, %v962, 0.0
  %v1050 = vsel %vm1034, %v961, 0.0
  %v1051 = vsel %vm1035, %v960, 0.0
  %v1052 = vsel %vm1036, %v959, 0.0
  %v1053 = vsel %vm1037, %v958, 0.0
  %v1054 = vsel %vm1038, %v957, 0.0
  %v1055 = vsel %vm1039, %v956, 0.0
  %v1056 = vsel %vm1040, %v955, 0.0
  %v1057 = vsel %vm1041, %v954, 0.0
  %v1058 = vsel %vm1042, %v953, 0.0
  %v1059 = vsel %vm1043, %v952, 0.0
  %v1060 = vsel %vm1044, %v951, 0.0
  %v1061 = vsel %vm1045, %v950, 0.0
  %v1062 = vrot.slane %v579, 1
  %v1063 = vrot.slane %v580, 1
  %v1064 = vrot.slane %v581, 1
  %v1065 = vrot.slane %v582, 1
  %v1066 = vrot.slane %v583, 1
  %v1067 = vrot.slane %v584, 1
  %v1068 = vrot.slane %v585, 1
  %v1069 = vrot.slane %v586, 1
  %v1070 = vrot.slane %v587, 1
  %v1071 = vrot.slane %v588, 1
  %v1072 = vrot.slane %v589, 1
  %v1073 = vrot.slane %v590, 1
  %v1074 = vrot.slane %v591, 1
  %v1075 = vrot.slane %v592, 1
  %v1076 = vrot.slane %v593, 1
  %v1077 = vrot.slane %v594, 1
  %vm1078 = vcmp.lt.s32.totalorder %v596, 7
  %v1079 = vsel %vm1078, %v1076, %v1077
  %v1080 = vsel %vm1078, %v1075, %v1076
  %v1081 = vsel %vm1078, %v1074, %v1075
  %v1082 = vsel %vm1078, %v1073, %v1074
  %v1083 = vsel %vm1078, %v1072, %v1073
  %v1084 = vsel %vm1078, %v1071, %v1072
  %v1085 = vsel %vm1078, %v1070, %v1071
  %v1086 = vsel %vm1078, %v1069, %v1070
  %v1087 = vsel %vm1078, %v1068, %v1069
  %v1088 = vsel %vm1078, %v1067, %v1068
  %v1089 = vsel %vm1078, %v1066, %v1067
  %v1090 = vsel %vm1078, %v1065, %v1066
  %v1091 = vsel %vm1078, %v1064, %v1065
  %v1092 = vsel %vm1078, %v1063, %v1064
  %v1093 = vsel %vm1078, %v1062, %v1063
  %v1094 = vsel %vm1078, %v1077, %v1062
  %vm1095 = vcmp.ge.s32.totalorder %v788, 4294967295
  %vm1096 = vcmp.ge.s32.totalorder %v789, 4294967295
  %vm1097 = vcmp.ge.s32.totalorder %v790, 4294967295
  %vm1098 = vcmp.ge.s32.totalorder %v791, 4294967295
  %vm1099 = vcmp.ge.s32.totalorder %v792, 4294967295
  %vm1100 = vcmp.ge.s32.totalorder %v793, 4294967295
  %vm1101 = vcmp.ge.s32.totalorder %v794, 4294967295
  %vm1102 = vcmp.ge.s32.totalorder %v795, 4294967295
  %vm1103 = vcmp.ge.s32.totalorder %v796, 4294967295
  %vm1104 = vcmp.ge.s32.totalorder %v797, 4294967295
  %vm1105 = vcmp.ge.s32.totalorder %v798, 4294967295
  %vm1106 = vcmp.ge.s32.totalorder %v799, 4294967295
  %vm1107 = vcmp.ge.s32.totalorder %v800, 4294967295
  %vm1108 = vcmp.ge.s32.totalorder %v801, 4294967295
  %vm1109 = vcmp.ge.s32.totalorder %v802, 4294967295
  %vm1110 = vcmp.ge.s32.totalorder %v803, 4294967295
  %vm1111 = vcmp.lt.s32.totalorder %v788, 15
  %vm1112 = vcmp.lt.s32.totalorder %v789, 15
  %vm1113 = vcmp.lt.s32.totalorder %v790, 15
  %vm1114 = vcmp.lt.s32.totalorder %v791, 15
  %vm1115 = vcmp.lt.s32.totalorder %v792, 15
  %vm1116 = vcmp.lt.s32.totalorder %v793, 15
  %vm1117 = vcmp.lt.s32.totalorder %v794, 15
  %vm1118 = vcmp.lt.s32.totalorder %v795, 15
  %vm1119 = vcmp.lt.s32.totalorder %v796, 15
  %vm1120 = vcmp.lt.s32.totalorder %v797, 15
  %vm1121 = vcmp.lt.s32.totalorder %v798, 15
  %vm1122 = vcmp.lt.s32.totalorder %v799, 15
  %vm1123 = vcmp.lt.s32.totalorder %v800, 15
  %vm1124 = vcmp.lt.s32.totalorder %v801, 15
  %vm1125 = vcmp.lt.s32.totalorder %v802, 15
  %vm1126 = vcmp.lt.s32.totalorder %v803, 15
  %vm1127 = vmand %vm1095, %vm1111
  %vm1128 = vmand %vm1096, %vm1112
  %vm1129 = vmand %vm1097, %vm1113
  %vm1130 = vmand %vm1098, %vm1114
  %vm1131 = vmand %vm1099, %vm1115
  %vm1132 = vmand %vm1100, %vm1116
  %vm1133 = vmand %vm1101, %vm1117
  %vm1134 = vmand %vm1102, %vm1118
  %vm1135 = vmand %vm1103, %vm1119
  %vm1136 = vmand %vm1104, %vm1120
  %vm1137 = vmand %vm1105, %vm1121
  %vm1138 = vmand %vm1106, %vm1122
  %vm1139 = vmand %vm1107, %vm1123
  %vm1140 = vmand %vm1108, %vm1124
  %vm1141 = vmand %vm1109, %vm1125
  %vm1142 = vmand %vm1110, %vm1126
  %v1143 = vsel %vm1127, 1, 0
  %v1144 = vsel %vm1128, 1, 0
  %v1145 = vsel %vm1129, 1, 0
  %v1146 = vsel %vm1130, 1, 0
  %v1147 = vsel %vm1131, 1, 0
  %v1148 = vsel %vm1132, 1, 0
  %v1149 = vsel %vm1133, 1, 0
  %v1150 = vsel %vm1134, 1, 0
  %v1151 = vsel %vm1135, 1, 0
  %v1152 = vsel %vm1136, 1, 0
  %v1153 = vsel %vm1137, 1, 0
  %v1154 = vsel %vm1138, 1, 0
  %v1155 = vsel %vm1139, 1, 0
  %v1156 = vsel %vm1140, 1, 0
  %v1157 = vsel %vm1141, 1, 0
  %v1158 = vsel %vm1142, 1, 0
  %vm1159 = vcmp.eq.s32.totalorder %v1143, 1
  %vm1160 = vcmp.eq.s32.totalorder %v1144, 1
  %vm1161 = vcmp.eq.s32.totalorder %v1145, 1
  %vm1162 = vcmp.eq.s32.totalorder %v1146, 1
  %vm1163 = vcmp.eq.s32.totalorder %v1147, 1
  %vm1164 = vcmp.eq.s32.totalorder %v1148, 1
  %vm1165 = vcmp.eq.s32.totalorder %v1149, 1
  %vm1166 = vcmp.eq.s32.totalorder %v1150, 1
  %vm1167 = vcmp.eq.s32.totalorder %v1151, 1
  %vm1168 = vcmp.eq.s32.totalorder %v1152, 1
  %vm1169 = vcmp.eq.s32.totalorder %v1153, 1
  %vm1170 = vcmp.eq.s32.totalorder %v1154, 1
  %vm1171 = vcmp.eq.s32.totalorder %v1155, 1
  %vm1172 = vcmp.eq.s32.totalorder %v1156, 1
  %vm1173 = vcmp.eq.s32.totalorder %v1157, 1
  %vm1174 = vcmp.eq.s32.totalorder %v1158, 1
  %v1175 = vsel %vm1159, %v1093, 0.0
  %v1176 = vsel %vm1160, %v1092, 0.0
  %v1177 = vsel %vm1161, %v1091, 0.0
  %v1178 = vsel %vm1162, %v1090, 0.0
  %v1179 = vsel %vm1163, %v1089, 0.0
  %v1180 = vsel %vm1164, %v1088, 0.0
  %v1181 = vsel %vm1165, %v1087, 0.0
  %v1182 = vsel %vm1166, %v1086, 0.0
  %v1183 = vsel %vm1167, %v1085, 0.0
  %v1184 = vsel %vm1168, %v1084, 0.0
  %v1185 = vsel %vm1169, %v1083, 0.0
  %v1186 = vsel %vm1170, %v1082, 0.0
  %v1187 = vsel %vm1171, %v1081, 0.0
  %v1188 = vsel %vm1172, %v1080, 0.0
  %v1189 = vsel %vm1173, %v1079, 0.0
  %v1190 = vsel %vm1174, %v1094, 0.0
  %v1191 = vrot.slane %v579, 2
  %v1192 = vrot.slane %v580, 2
  %v1193 = vrot.slane %v581, 2
  %v1194 = vrot.slane %v582, 2
  %v1195 = vrot.slane %v583, 2
  %v1196 = vrot.slane %v584, 2
  %v1197 = vrot.slane %v585, 2
  %v1198 = vrot.slane %v586, 2
  %v1199 = vrot.slane %v587, 2
  %v1200 = vrot.slane %v588, 2
  %v1201 = vrot.slane %v589, 2
  %v1202 = vrot.slane %v590, 2
  %v1203 = vrot.slane %v591, 2
  %v1204 = vrot.slane %v592, 2
  %v1205 = vrot.slane %v593, 2
  %v1206 = vrot.slane %v594, 2
  %vm1207 = vcmp.lt.s32.totalorder %v596, 6
  %v1208 = vsel %vm1207, %v1205, %v1206
  %v1209 = vsel %vm1207, %v1204, %v1205
  %v1210 = vsel %vm1207, %v1203, %v1204
  %v1211 = vsel %vm1207, %v1202, %v1203
  %v1212 = vsel %vm1207, %v1201, %v1202
  %v1213 = vsel %vm1207, %v1200, %v1201
  %v1214 = vsel %vm1207, %v1199, %v1200
  %v1215 = vsel %vm1207, %v1198, %v1199
  %v1216 = vsel %vm1207, %v1197, %v1198
  %v1217 = vsel %vm1207, %v1196, %v1197
  %v1218 = vsel %vm1207, %v1195, %v1196
  %v1219 = vsel %vm1207, %v1194, %v1195
  %v1220 = vsel %vm1207, %v1193, %v1194
  %v1221 = vsel %vm1207, %v1192, %v1193
  %v1222 = vsel %vm1207, %v1191, %v1192
  %v1223 = vsel %vm1207, %v1206, %v1191
  %vm1224 = vcmp.ge.s32.totalorder %v788, 4294967294
  %vm1225 = vcmp.ge.s32.totalorder %v789, 4294967294
  %vm1226 = vcmp.ge.s32.totalorder %v790, 4294967294
  %vm1227 = vcmp.ge.s32.totalorder %v791, 4294967294
  %vm1228 = vcmp.ge.s32.totalorder %v792, 4294967294
  %vm1229 = vcmp.ge.s32.totalorder %v793, 4294967294
  %vm1230 = vcmp.ge.s32.totalorder %v794, 4294967294
  %vm1231 = vcmp.ge.s32.totalorder %v795, 4294967294
  %vm1232 = vcmp.ge.s32.totalorder %v796, 4294967294
  %vm1233 = vcmp.ge.s32.totalorder %v797, 4294967294
  %vm1234 = vcmp.ge.s32.totalorder %v798, 4294967294
  %vm1235 = vcmp.ge.s32.totalorder %v799, 4294967294
  %vm1236 = vcmp.ge.s32.totalorder %v800, 4294967294
  %vm1237 = vcmp.ge.s32.totalorder %v801, 4294967294
  %vm1238 = vcmp.ge.s32.totalorder %v802, 4294967294
  %vm1239 = vcmp.ge.s32.totalorder %v803, 4294967294
  %vm1240 = vcmp.lt.s32.totalorder %v788, 14
  %vm1241 = vcmp.lt.s32.totalorder %v789, 14
  %vm1242 = vcmp.lt.s32.totalorder %v790, 14
  %vm1243 = vcmp.lt.s32.totalorder %v791, 14
  %vm1244 = vcmp.lt.s32.totalorder %v792, 14
  %vm1245 = vcmp.lt.s32.totalorder %v793, 14
  %vm1246 = vcmp.lt.s32.totalorder %v794, 14
  %vm1247 = vcmp.lt.s32.totalorder %v795, 14
  %vm1248 = vcmp.lt.s32.totalorder %v796, 14
  %vm1249 = vcmp.lt.s32.totalorder %v797, 14
  %vm1250 = vcmp.lt.s32.totalorder %v798, 14
  %vm1251 = vcmp.lt.s32.totalorder %v799, 14
  %vm1252 = vcmp.lt.s32.totalorder %v800, 14
  %vm1253 = vcmp.lt.s32.totalorder %v801, 14
  %vm1254 = vcmp.lt.s32.totalorder %v802, 14
  %vm1255 = vcmp.lt.s32.totalorder %v803, 14
  %vm1256 = vmand %vm1224, %vm1240
  %vm1257 = vmand %vm1225, %vm1241
  %vm1258 = vmand %vm1226, %vm1242
  %vm1259 = vmand %vm1227, %vm1243
  %vm1260 = vmand %vm1228, %vm1244
  %vm1261 = vmand %vm1229, %vm1245
  %vm1262 = vmand %vm1230, %vm1246
  %vm1263 = vmand %vm1231, %vm1247
  %vm1264 = vmand %vm1232, %vm1248
  %vm1265 = vmand %vm1233, %vm1249
  %vm1266 = vmand %vm1234, %vm1250
  %vm1267 = vmand %vm1235, %vm1251
  %vm1268 = vmand %vm1236, %vm1252
  %vm1269 = vmand %vm1237, %vm1253
  %vm1270 = vmand %vm1238, %vm1254
  %vm1271 = vmand %vm1239, %vm1255
  %v1272 = vsel %vm1256, 1, 0
  %v1273 = vsel %vm1257, 1, 0
  %v1274 = vsel %vm1258, 1, 0
  %v1275 = vsel %vm1259, 1, 0
  %v1276 = vsel %vm1260, 1, 0
  %v1277 = vsel %vm1261, 1, 0
  %v1278 = vsel %vm1262, 1, 0
  %v1279 = vsel %vm1263, 1, 0
  %v1280 = vsel %vm1264, 1, 0
  %v1281 = vsel %vm1265, 1, 0
  %v1282 = vsel %vm1266, 1, 0
  %v1283 = vsel %vm1267, 1, 0
  %v1284 = vsel %vm1268, 1, 0
  %v1285 = vsel %vm1269, 1, 0
  %v1286 = vsel %vm1270, 1, 0
  %v1287 = vsel %vm1271, 1, 0
  %vm1288 = vcmp.eq.s32.totalorder %v1272, 1
  %vm1289 = vcmp.eq.s32.totalorder %v1273, 1
  %vm1290 = vcmp.eq.s32.totalorder %v1274, 1
  %vm1291 = vcmp.eq.s32.totalorder %v1275, 1
  %vm1292 = vcmp.eq.s32.totalorder %v1276, 1
  %vm1293 = vcmp.eq.s32.totalorder %v1277, 1
  %vm1294 = vcmp.eq.s32.totalorder %v1278, 1
  %vm1295 = vcmp.eq.s32.totalorder %v1279, 1
  %vm1296 = vcmp.eq.s32.totalorder %v1280, 1
  %vm1297 = vcmp.eq.s32.totalorder %v1281, 1
  %vm1298 = vcmp.eq.s32.totalorder %v1282, 1
  %vm1299 = vcmp.eq.s32.totalorder %v1283, 1
  %vm1300 = vcmp.eq.s32.totalorder %v1284, 1
  %vm1301 = vcmp.eq.s32.totalorder %v1285, 1
  %vm1302 = vcmp.eq.s32.totalorder %v1286, 1
  %vm1303 = vcmp.eq.s32.totalorder %v1287, 1
  %v1304 = vsel %vm1288, %v1222, 0.0
  %v1305 = vsel %vm1289, %v1221, 0.0
  %v1306 = vsel %vm1290, %v1220, 0.0
  %v1307 = vsel %vm1291, %v1219, 0.0
  %v1308 = vsel %vm1292, %v1218, 0.0
  %v1309 = vsel %vm1293, %v1217, 0.0
  %v1310 = vsel %vm1294, %v1216, 0.0
  %v1311 = vsel %vm1295, %v1215, 0.0
  %v1312 = vsel %vm1296, %v1214, 0.0
  %v1313 = vsel %vm1297, %v1213, 0.0
  %v1314 = vsel %vm1298, %v1212, 0.0
  %v1315 = vsel %vm1299, %v1211, 0.0
  %v1316 = vsel %vm1300, %v1210, 0.0
  %v1317 = vsel %vm1301, %v1209, 0.0
  %v1318 = vsel %vm1302, %v1208, 0.0
  %v1319 = vsel %vm1303, %v1223, 0.0
  %1336 = vrot.lane.b32.xlu0 %v1046, 16
  %v1337 = vpop.permute.xlu0 %1336
  %1338 = vrot.lane.b32.xlu0 %v1047, 16
  %v1339 = vpop.permute.xlu0 %1338
  %1340 = vrot.lane.b32.xlu0 %v1048, 16
  %v1341 = vpop.permute.xlu0 %1340
  %1342 = vrot.lane.b32.xlu0 %v1049, 16
  %v1343 = vpop.permute.xlu0 %1342
  %1344 = vrot.lane.b32.xlu0 %v1050, 16
  %v1345 = vpop.permute.xlu0 %1344
  %1346 = vrot.lane.b32.xlu0 %v1051, 16
  %v1347 = vpop.permute.xlu0 %1346
  %1348 = vrot.lane.b32.xlu0 %v1052, 16
  %v1349 = vpop.permute.xlu0 %1348
  %1350 = vrot.lane.b32.xlu0 %v1053, 16
  %v1351 = vpop.permute.xlu0 %1350
  %1352 = vrot.lane.b32.xlu0 %v1054, 16
  %v1353 = vpop.permute.xlu0 %1352
  %1354 = vrot.lane.b32.xlu0 %v1055, 16
  %v1355 = vpop.permute.xlu0 %1354
  %1356 = vrot.lane.b32.xlu0 %v1056, 16
  %v1357 = vpop.permute.xlu0 %1356
  %1358 = vrot.lane.b32.xlu0 %v1057, 16
  %v1359 = vpop.permute.xlu0 %1358
  %1360 = vrot.lane.b32.xlu0 %v1058, 16
  %v1361 = vpop.permute.xlu0 %1360
  %1362 = vrot.lane.b32.xlu0 %v1059, 16
  %v1363 = vpop.permute.xlu0 %1362
  %1364 = vrot.lane.b32.xlu0 %v1060, 16
  %v1365 = vpop.permute.xlu0 %1364
  %1366 = vrot.lane.b32.xlu0 %v1061, 16
  %v1367 = vpop.permute.xlu0 %1366
  %1400 = vrot.lane.b32.xlu0 %v579, 32
  %v1401 = vpop.permute.xlu0 %1400
  %1402 = vrot.lane.b32.xlu0 %v580, 32
  %v1403 = vpop.permute.xlu0 %1402
  %1404 = vrot.lane.b32.xlu0 %v581, 32
  %v1405 = vpop.permute.xlu0 %1404
  %1406 = vrot.lane.b32.xlu0 %v582, 32
  %v1407 = vpop.permute.xlu0 %1406
  %1408 = vrot.lane.b32.xlu0 %v583, 32
  %v1409 = vpop.permute.xlu0 %1408
  %1410 = vrot.lane.b32.xlu0 %v584, 32
  %v1411 = vpop.permute.xlu0 %1410
  %1412 = vrot.lane.b32.xlu0 %v585, 32
  %v1413 = vpop.permute.xlu0 %1412
  %1414 = vrot.lane.b32.xlu0 %v586, 32
  %v1415 = vpop.permute.xlu0 %1414
  %1416 = vrot.lane.b32.xlu0 %v587, 32
  %v1417 = vpop.permute.xlu0 %1416
  %1418 = vrot.lane.b32.xlu0 %v588, 32
  %v1419 = vpop.permute.xlu0 %1418
  %1420 = vrot.lane.b32.xlu0 %v589, 32
  %v1421 = vpop.permute.xlu0 %1420
  %1422 = vrot.lane.b32.xlu0 %v590, 32
  %v1423 = vpop.permute.xlu0 %1422
  %1424 = vrot.lane.b32.xlu0 %v591, 32
  %v1425 = vpop.permute.xlu0 %1424
  %1426 = vrot.lane.b32.xlu0 %v592, 32
  %v1427 = vpop.permute.xlu0 %1426
  %1428 = vrot.lane.b32.xlu0 %v593, 32
  %v1429 = vpop.permute.xlu0 %1428
  %1430 = vrot.lane.b32.xlu0 %v594, 32
  %v1431 = vpop.permute.xlu0 %1430
  %1464 = vrot.lane.b32.xlu0 %v1175, 48
  %v1465 = vpop.permute.xlu0 %1464
  %1466 = vrot.lane.b32.xlu0 %v1176, 48
  %v1467 = vpop.permute.xlu0 %1466
  %1468 = vrot.lane.b32.xlu0 %v1177, 48
  %v1469 = vpop.permute.xlu0 %1468
  %1470 = vrot.lane.b32.xlu0 %v1178, 48
  %v1471 = vpop.permute.xlu0 %1470
  %1472 = vrot.lane.b32.xlu0 %v1179, 48
  %v1473 = vpop.permute.xlu0 %1472
  %1474 = vrot.lane.b32.xlu0 %v1180, 48
  %v1475 = vpop.permute.xlu0 %1474
  %1476 = vrot.lane.b32.xlu0 %v1181, 48
  %v1477 = vpop.permute.xlu0 %1476
  %1478 = vrot.lane.b32.xlu0 %v1182, 48
  %v1479 = vpop.permute.xlu0 %1478
  %1480 = vrot.lane.b32.xlu0 %v1183, 48
  %v1481 = vpop.permute.xlu0 %1480
  %1482 = vrot.lane.b32.xlu0 %v1184, 48
  %v1483 = vpop.permute.xlu0 %1482
  %1484 = vrot.lane.b32.xlu0 %v1185, 48
  %v1485 = vpop.permute.xlu0 %1484
  %1486 = vrot.lane.b32.xlu0 %v1186, 48
  %v1487 = vpop.permute.xlu0 %1486
  %1488 = vrot.lane.b32.xlu0 %v1187, 48
  %v1489 = vpop.permute.xlu0 %1488
  %1490 = vrot.lane.b32.xlu0 %v1188, 48
  %v1491 = vpop.permute.xlu0 %1490
  %1492 = vrot.lane.b32.xlu0 %v1189, 48
  %v1493 = vpop.permute.xlu0 %1492
  %1494 = vrot.lane.b32.xlu0 %v1190, 48
  %v1495 = vpop.permute.xlu0 %1494
  %1528 = vrot.lane.b32.xlu0 %v1304, 64
  %v1529 = vpop.permute.xlu0 %1528
  %1530 = vrot.lane.b32.xlu0 %v1305, 64
  %v1531 = vpop.permute.xlu0 %1530
  %1532 = vrot.lane.b32.xlu0 %v1306, 64
  %v1533 = vpop.permute.xlu0 %1532
  %1534 = vrot.lane.b32.xlu0 %v1307, 64
  %v1535 = vpop.permute.xlu0 %1534
  %1536 = vrot.lane.b32.xlu0 %v1308, 64
  %v1537 = vpop.permute.xlu0 %1536
  %1538 = vrot.lane.b32.xlu0 %v1309, 64
  %v1539 = vpop.permute.xlu0 %1538
  %1540 = vrot.lane.b32.xlu0 %v1310, 64
  %v1541 = vpop.permute.xlu0 %1540
  %1542 = vrot.lane.b32.xlu0 %v1311, 64
  %v1543 = vpop.permute.xlu0 %1542
  %1544 = vrot.lane.b32.xlu0 %v1312, 64
  %v1545 = vpop.permute.xlu0 %1544
  %1546 = vrot.lane.b32.xlu0 %v1313, 64
  %v1547 = vpop.permute.xlu0 %1546
  %1548 = vrot.lane.b32.xlu0 %v1314, 64
  %v1549 = vpop.permute.xlu0 %1548
  %1550 = vrot.lane.b32.xlu0 %v1315, 64
  %v1551 = vpop.permute.xlu0 %1550
  %1552 = vrot.lane.b32.xlu0 %v1316, 64
  %v1553 = vpop.permute.xlu0 %1552
  %1554 = vrot.lane.b32.xlu0 %v1317, 64
  %v1555 = vpop.permute.xlu0 %1554
  %1556 = vrot.lane.b32.xlu0 %v1318, 64
  %v1557 = vpop.permute.xlu0 %1556
  %1558 = vrot.lane.b32.xlu0 %v1319, 64
  %v1559 = vpop.permute.xlu0 %1558
  %vm1576 = vcmask 130048
  %v1577 = vsel %vm1576, %v917, %v1337
  %v1578 = vsel %vm1576, %v918, %v1339
  %v1579 = vsel %vm1576, %v919, %v1341
  %v1580 = vsel %vm1576, %v920, %v1343
  %v1581 = vsel %vm1576, %v921, %v1345
  %v1582 = vsel %vm1576, %v922, %v1347
  %v1583 = vsel %vm1576, %v923, %v1349
  %v1584 = vsel %vm1576, %v924, %v1351
  %v1585 = vsel %vm1576, %v925, %v1353
  %v1586 = vsel %vm1576, %v926, %v1355
  %v1587 = vsel %vm1576, %v927, %v1357
  %v1588 = vsel %vm1576, %v928, %v1359
  %v1589 = vsel %vm1576, %v929, %v1361
  %v1590 = vsel %vm1576, %v930, %v1363
  %v1591 = vsel %vm1576, %v931, %v1365
  %v1592 = vsel %vm1576, %v932, %v1367
  %vm1593 = vcmask 261120
  %v1594 = vsel %vm1593, %v1577, %v1401
  %v1595 = vsel %vm1593, %v1578, %v1403
  %v1596 = vsel %vm1593, %v1579, %v1405
  %v1597 = vsel %vm1593, %v1580, %v1407
  %v1598 = vsel %vm1593, %v1581, %v1409
  %v1599 = vsel %vm1593, %v1582, %v1411
  %v1600 = vsel %vm1593, %v1583, %v1413
  %v1601 = vsel %vm1593, %v1584, %v1415
  %v1602 = vsel %vm1593, %v1585, %v1417
  %v1603 = vsel %vm1593, %v1586, %v1419
  %v1604 = vsel %vm1593, %v1587, %v1421
  %v1605 = vsel %vm1593, %v1588, %v1423
  %v1606 = vsel %vm1593, %v1589, %v1425
  %v1607 = vsel %vm1593, %v1590, %v1427
  %v1608 = vsel %vm1593, %v1591, %v1429
  %v1609 = vsel %vm1593, %v1592, %v1431
  %vm1610 = vcmask 392192
  %v1611 = vsel %vm1610, %v1594, %v1465
  %v1612 = vsel %vm1610, %v1595, %v1467
  %v1613 = vsel %vm1610, %v1596, %v1469
  %v1614 = vsel %vm1610, %v1597, %v1471
  %v1615 = vsel %vm1610, %v1598, %v1473
  %v1616 = vsel %vm1610, %v1599, %v1475
  %v1617 = vsel %vm1610, %v1600, %v1477
  %v1618 = vsel %vm1610, %v1601, %v1479
  %v1619 = vsel %vm1610, %v1602, %v1481
  %v1620 = vsel %vm1610, %v1603, %v1483
  %v1621 = vsel %vm1610, %v1604, %v1485
  %v1622 = vsel %vm1610, %v1605, %v1487
  %v1623 = vsel %vm1610, %v1606, %v1489
  %v1624 = vsel %vm1610, %v1607, %v1491
  %v1625 = vsel %vm1610, %v1608, %v1493
  %v1626 = vsel %vm1610, %v1609, %v1495
  %vm1627 = vcmask 523264
  %v1628 = vsel %vm1627, %v1611, %v1529
  %v1629 = vsel %vm1627, %v1612, %v1531
  %v1630 = vsel %vm1627, %v1613, %v1533
  %v1631 = vsel %vm1627, %v1614, %v1535
  %v1632 = vsel %vm1627, %v1615, %v1537
  %v1633 = vsel %vm1627, %v1616, %v1539
  %v1634 = vsel %vm1627, %v1617, %v1541
  %v1635 = vsel %vm1627, %v1618, %v1543
  %v1636 = vsel %vm1627, %v1619, %v1545
  %v1637 = vsel %vm1627, %v1620, %v1547
  %v1638 = vsel %vm1627, %v1621, %v1549
  %v1639 = vsel %vm1627, %v1622, %v1551
  %v1640 = vsel %vm1627, %v1623, %v1553
  %v1641 = vsel %vm1627, %v1624, %v1555
  %v1642 = vsel %vm1627, %v1625, %v1557
  %v1643 = vsel %vm1627, %v1626, %v1559
  %vm1644 = vcmask 654336
  %v1645 = vsel %vm1644, %v1628, 0.0
  %v1646 = vsel %vm1644, %v1629, 0.0
  %v1647 = vsel %vm1644, %v1630, 0.0
  %v1648 = vsel %vm1644, %v1631, 0.0
  %v1649 = vsel %vm1644, %v1632, 0.0
  %v1650 = vsel %vm1644, %v1633, 0.0
  %v1651 = vsel %vm1644, %v1634, 0.0
  %v1652 = vsel %vm1644, %v1635, 0.0
  %v1653 = vsel %vm1644, %v1636, 0.0
  %v1654 = vsel %vm1644, %v1637, 0.0
  %v1655 = vsel %vm1644, %v1638, 0.0
  %v1656 = vsel %vm1644, %v1639, 0.0
  %v1657 = vsel %vm1644, %v1640, 0.0
  %v1658 = vsel %vm1644, %v1641, 0.0
  %v1659 = vsel %vm1644, %v1642, 0.0
  %v1660 = vsel %vm1644, %v1643, 0.0
  %v1661 = vld [vmem:[%s2] sm:$0xff]
  %v1662 = vld [vmem:[%s2 + $0x8] sm:$0xff]
  %v1663 = vld [vmem:[%s2 + $0x10] sm:$0xff]
  %v1664 = vld [vmem:[%s2 + $0x18] sm:$0xff]
  %v1665 = vld [vmem:[%s2 + $0x20] sm:$0xff]
  %v1666 = vld [vmem:[%s2 + $0x28] sm:$0xff]
  %v1667 = vld [vmem:[%s2 + $0x30] sm:$0xff]
  %v1668 = vld [vmem:[%s2 + $0x38] sm:$0xff]
  %v1669 = vld [vmem:[%s2 + $0x40] sm:$0xff]
  %v1670 = vld [vmem:[%s2 + $0x48] sm:$0xff]
  %v1671 = vld [vmem:[%s2 + $0x50] sm:$0xff]
  %v1672 = vld [vmem:[%s2 + $0x58] sm:$0xff]
  %v1673 = vld [vmem:[%s2 + $0x60] sm:$0xff]
  %v1674 = vld [vmem:[%s2 + $0x68] sm:$0xff]
  %v1675 = vld [vmem:[%s2 + $0x70] sm:$0xff]
  %v1676 = vld [vmem:[%s2 + $0x78] sm:$0xff]
  %1677 = vmatprep.subr.mxu0 0.0
  %1678 = vmatpush1.msra.mxu0 %v1661
  %1679 = vmatprep.subr.mxu0 0.0
  %1680 = vmatpush1.msra.mxu0 %v1662
  %1681 = vmatprep.subr.mxu0 0.0
  %1682 = vmatpush1.msra.mxu0 %v1663
  %1683 = vmatprep.subr.mxu0 0.0
  %1684 = vmatpush1.msra.mxu0 %v1664
  %1685 = vmatprep.subr.mxu0 0.0
  %1686 = vmatpush1.msra.mxu0 %v1665
  %1687 = vmatprep.subr.mxu0 0.0
  %1688 = vmatpush1.msra.mxu0 %v1666
  %1689 = vmatprep.subr.mxu0 0.0
  %1690 = vmatpush1.msra.mxu0 %v1667
  %1691 = vmatprep.subr.mxu0 0.0
  %1692 = vmatpush1.msra.mxu0 %v1668
  %1693 = vmatprep.subr.mxu0 0.0
  %1694 = vmatpush1.msra.mxu0 %v1669
  %1695 = vmatprep.subr.mxu0 0.0
  %1696 = vmatpush1.msra.mxu0 %v1670
  %1697 = vmatprep.subr.mxu0 0.0
  %1698 = vmatpush1.msra.mxu0 %v1671
  %1699 = vmatprep.subr.mxu0 0.0
  %1700 = vmatpush1.msra.mxu0 %v1672
  %1701 = vmatprep.subr.mxu0 0.0
  %1702 = vmatpush1.msra.mxu0 %v1673
  %1703 = vmatprep.subr.mxu0 0.0
  %1704 = vmatpush1.msra.mxu0 %v1674
  %1705 = vmatprep.subr.mxu0 0.0
  %1706 = vmatpush1.msra.mxu0 %v1675
  %1707 = vmatprep.subr.mxu0 0.0
  %1708 = vmatpush1.msra.mxu0 %v1676
  %1709 = vmatprep.subr.mxu0 0.0
  %1710 = vmatpush1.msra.mxu0 0.0
  %1711 = vmatprep.subr.mxu0 0.0
  %1712 = vmatpush1.msra.mxu0 0.0
  %1713 = vmatprep.subr.mxu0 0.0
  %1714 = vmatpush1.msra.mxu0 0.0
  %1715 = vmatprep.subr.mxu0 0.0
  %1716 = vmatpush1.msra.mxu0 0.0
  %1717 = vmatprep.subr.mxu0 0.0
  %1718 = vmatpush1.msra.mxu0 0.0
  %1719 = vmatprep.subr.mxu0 0.0
  %1720 = vmatpush1.msra.mxu0 0.0
  %1721 = vmatprep.subr.mxu0 0.0
  %1722 = vmatpush1.msra.mxu0 0.0
  %1723 = vmatprep.subr.mxu0 0.0
  %1724 = vmatpush1.msra.mxu0 0.0
  %1725 = vmatprep.subr.mxu0 0.0
  %1726 = vmatpush1.msra.mxu0 0.0
  %1727 = vmatprep.subr.mxu0 0.0
  %1728 = vmatpush1.msra.mxu0 0.0
  %1729 = vmatprep.subr.mxu0 0.0
  %1730 = vmatpush1.msra.mxu0 0.0
  %1731 = vmatprep.subr.mxu0 0.0
  %1732 = vmatpush1.msra.mxu0 0.0
  %1733 = vmatprep.subr.mxu0 0.0
  %1734 = vmatpush1.msra.mxu0 0.0
  %1735 = vmatprep.subr.mxu0 0.0
  %1736 = vmatpush1.msra.mxu0 0.0
  %1737 = vmatprep.subr.mxu0 0.0
  %1738 = vmatpush1.msra.mxu0 0.0
  %1739 = vmatprep.subr.mxu0 0.0
  %1740 = vmatpush1.msra.mxu0 0.0
  %1741 = vmatprep.mubr.f32.mxu0 0.0
  %1742 = vmatmul.mubr.f32.gmra.mrb[0].mxu0 %v1645
  %v1743 = vpop.f32.mrb[0].mxu0
  %v1744 = vadd.f32 0.0, %v1743
  %v1745 = vpop.f32.mrb[0].mxu0
  %1746 = vmatprep.mubr.f32.mxu0 0.0
  %1747 = vmatmul.mubr.f32.gmra.mrb[0].mxu0 %v1646
  %v1748 = vpop.f32.mrb[0].mxu0
  %v1749 = vadd.f32 0.0, %v1748
  %v1750 = vpop.f32.mrb[0].mxu0
  %1751 = vmatprep.mubr.f32.mxu0 0.0
  %1752 = vmatmul.mubr.f32.gmra.mrb[0].mxu0 %v1647
  %v1753 = vpop.f32.mrb[0].mxu0
  %v1754 = vadd.f32 0.0, %v1753
  %v1755 = vpop.f32.mrb[0].mxu0
  %1756 = vmatprep.mubr.f32.mxu0 0.0
  %1757 = vmatmul.mubr.f32.gmra.mrb[0].mxu0 %v1648
  %v1758 = vpop.f32.mrb[0].mxu0
  %v1759 = vadd.f32 0.0, %v1758
  %v1760 = vpop.f32.mrb[0].mxu0
  %1761 = vmatprep.mubr.f32.mxu0 0.0
  %1762 = vmatmul.mubr.f32.gmra.mrb[0].mxu0 %v1649
  %v1763 = vpop.f32.mrb[0].mxu0
  %v1764 = vadd.f32 0.0, %v1763
  %v1765 = vpop.f32.mrb[0].mxu0
  %1766 = vmatprep.mubr.f32.mxu0 0.0
  %1767 = vmatmul.mubr.f32.gmra.mrb[0].mxu0 %v1650
  %v1768 = vpop.f32.mrb[0].mxu0
  %v1769 = vadd.f32 0.0, %v1768
  %v1770 = vpop.f32.mrb[0].mxu0
  %1771 = vmatprep.mubr.f32.mxu0 0.0
  %1772 = vmatmul.mubr.f32.gmra.mrb[0].mxu0 %v1651
  %v1773 = vpop.f32.mrb[0].mxu0
  %v1774 = vadd.f32 0.0, %v1773
  %v1775 = vpop.f32.mrb[0].mxu0
  %1776 = vmatprep.mubr.f32.mxu0 0.0
  %1777 = vmatmul.mubr.f32.gmra.mrb[0].mxu0 %v1652
  %v1778 = vpop.f32.mrb[0].mxu0
  %v1779 = vadd.f32 0.0, %v1778
  %v1780 = vpop.f32.mrb[0].mxu0
  %1781 = vmatprep.mubr.f32.mxu0 0.0
  %1782 = vmatmul.mubr.f32.gmra.mrb[0].mxu0 %v1653
  %v1783 = vpop.f32.mrb[0].mxu0
  %v1784 = vadd.f32 0.0, %v1783
  %v1785 = vpop.f32.mrb[0].mxu0
  %1786 = vmatprep.mubr.f32.mxu0 0.0
  %1787 = vmatmul.mubr.f32.gmra.mrb[0].mxu0 %v1654
  %v1788 = vpop.f32.mrb[0].mxu0
  %v1789 = vadd.f32 0.0, %v1788
  %v1790 = vpop.f32.mrb[0].mxu0
  %1791 = vmatprep.mubr.f32.mxu0 0.0
  %1792 = vmatmul.mubr.f32.gmra.mrb[0].mxu0 %v1655
  %v1793 = vpop.f32.mrb[0].mxu0
  %v1794 = vadd.f32 0.0, %v1793
  %v1795 = vpop.f32.mrb[0].mxu0
  %1796 = vmatprep.mubr.f32.mxu0 0.0
  %1797 = vmatmul.mubr.f32.gmra.mrb[0].mxu0 %v1656
  %v1798 = vpop.f32.mrb[0].mxu0
  %v1799 = vadd.f32 0.0, %v1798
  %v1800 = vpop.f32.mrb[0].mxu0
  %1801 = vmatprep.mubr.f32.mxu0 0.0
  %1802 = vmatmul.mubr.f32.gmra.mrb[0].mxu0 %v1657
  %v1803 = vpop.f32.mrb[0].mxu0
  %v1804 = vadd.f32 0.0, %v1803
  %v1805 = vpop.f32.mrb[0].mxu0
  %1806 = vmatprep.mubr.f32.mxu0 0.0
  %1807 = vmatmul.mubr.f32.gmra.mrb[0].mxu0 %v1658
  %v1808 = vpop.f32.mrb[0].mxu0
  %v1809 = vadd.f32 0.0, %v1808
  %v1810 = vpop.f32.mrb[0].mxu0
  %1811 = vmatprep.mubr.f32.mxu0 0.0
  %1812 = vmatmul.mubr.f32.gmra.mrb[0].mxu0 %v1659
  %v1813 = vpop.f32.mrb[0].mxu0
  %v1814 = vadd.f32 0.0, %v1813
  %v1815 = vpop.f32.mrb[0].mxu0
  %1816 = vmatprep.mubr.f32.mxu0 0.0
  %1817 = vmatmul.mubr.f32.gmra.mrb[0].mxu0 %v1660
  %v1818 = vpop.f32.mrb[0].mxu0
  %v1819 = vadd.f32 0.0, %v1818
  %v1820 = vpop.f32.mrb[0].mxu0
  %1821 = vdwg.mxu0
  %v1822 = vlaneseq
  %v1823 = vshrl.u32 %v1822, 7
  %v1824 = vsub.s32 7, %v1823
  %v1825 = vrot.slane %v21, %v1824
  %v1826 = vmul.f32 %v1744, %v1825
  %v1827 = vmul.f32 %v1749, %v1825
  %v1828 = vmul.f32 %v1754, %v1825
  %v1829 = vmul.f32 %v1759, %v1825
  %v1830 = vmul.f32 %v1764, %v1825
  %v1831 = vmul.f32 %v1769, %v1825
  %v1832 = vmul.f32 %v1774, %v1825
  %v1833 = vmul.f32 %v1779, %v1825
  %v1834 = vmul.f32 %v1784, %v1825
  %v1835 = vmul.f32 %v1789, %v1825
  %v1836 = vmul.f32 %v1794, %v1825
  %v1837 = vmul.f32 %v1799, %v1825
  %v1838 = vmul.f32 %v1804, %v1825
  %v1839 = vmul.f32 %v1809, %v1825
  %v1840 = vmul.f32 %v1814, %v1825
  %v1841 = vmul.f32 %v1819, %v1825
  %v1842 = vlaneseq
  %v1843 = vshrl.u32 %v1842, 7
  %v1844 = vsub.s32 0, %v1843
  %v1845 = vrot.slane %v22, %v1844
  %v1846 = vadd.f32 %v1826, %v1845
  %v1847 = vadd.f32 %v1827, %v1845
  %v1848 = vadd.f32 %v1828, %v1845
  %v1849 = vadd.f32 %v1829, %v1845
  %v1850 = vadd.f32 %v1830, %v1845
  %v1851 = vadd.f32 %v1831, %v1845
  %v1852 = vadd.f32 %v1832, %v1845
  %v1853 = vadd.f32 %v1833, %v1845
  %v1854 = vadd.f32 %v1834, %v1845
  %v1855 = vadd.f32 %v1835, %v1845
  %v1856 = vadd.f32 %v1836, %v1845
  %v1857 = vadd.f32 %v1837, %v1845
  %v1858 = vadd.f32 %v1838, %v1845
  %v1859 = vadd.f32 %v1839, %v1845
  %v1860 = vadd.f32 %v1840, %v1845
  %v1861 = vadd.f32 %v1841, %v1845
  %v1862 = vmax.f32 %v1846, 0.0
  %v1863 = vmax.f32 %v1847, 0.0
  %v1864 = vmax.f32 %v1848, 0.0
  %v1865 = vmax.f32 %v1849, 0.0
  %v1866 = vmax.f32 %v1850, 0.0
  %v1867 = vmax.f32 %v1851, 0.0
  %v1868 = vmax.f32 %v1852, 0.0
  %v1869 = vmax.f32 %v1853, 0.0
  %v1870 = vmax.f32 %v1854, 0.0
  %v1871 = vmax.f32 %v1855, 0.0
  %v1872 = vmax.f32 %v1856, 0.0
  %v1873 = vmax.f32 %v1857, 0.0
  %v1874 = vmax.f32 %v1858, 0.0
  %v1875 = vmax.f32 %v1859, 0.0
  %v1876 = vmax.f32 %v1860, 0.0
  %v1877 = vmax.f32 %v1861, 0.0
  %v1878 = vadd.f32 %v1862, %v1863
  %v1879 = vrot.slane %v1878, 4
  %v1880 = vadd.f32 %v1878, %v1879
  %v1881 = vrot.slane %v1880, 2
  %v1882 = vadd.f32 %v1880, %v1881
  %v1883 = vrot.slane %v1882, 1
  %v1884 = vadd.f32 %v1882, %v1883
  %v1885 = vadd.f32 %v1864, %v1865
  %v1886 = vrot.slane %v1885, 4
  %v1887 = vadd.f32 %v1885, %v1886
  %v1888 = vrot.slane %v1887, 2
  %v1889 = vadd.f32 %v1887, %v1888
  %v1890 = vrot.slane %v1889, 1
  %v1891 = vadd.f32 %v1889, %v1890
  %v1892 = vadd.f32 %v1866, %v1867
  %v1893 = vrot.slane %v1892, 4
  %v1894 = vadd.f32 %v1892, %v1893
  %v1895 = vrot.slane %v1894, 2
  %v1896 = vadd.f32 %v1894, %v1895
  %v1897 = vrot.slane %v1896, 1
  %v1898 = vadd.f32 %v1896, %v1897
  %v1899 = vadd.f32 %v1868, %v1869
  %v1900 = vrot.slane %v1899, 4
  %v1901 = vadd.f32 %v1899, %v1900
  %v1902 = vrot.slane %v1901, 2
  %v1903 = vadd.f32 %v1901, %v1902
  %v1904 = vrot.slane %v1903, 1
  %v1905 = vadd.f32 %v1903, %v1904
  %v1906 = vadd.f32 %v1870, %v1871
  %v1907 = vrot.slane %v1906, 4
  %v1908 = vadd.f32 %v1906, %v1907
  %v1909 = vrot.slane %v1908, 2
  %v1910 = vadd.f32 %v1908, %v1909
  %v1911 = vrot.slane %v1910, 1
  %v1912 = vadd.f32 %v1910, %v1911
  %v1913 = vadd.f32 %v1872, %v1873
  %v1914 = vrot.slane %v1913, 4
  %v1915 = vadd.f32 %v1913, %v1914
  %v1916 = vrot.slane %v1915, 2
  %v1917 = vadd.f32 %v1915, %v1916
  %v1918 = vrot.slane %v1917, 1
  %v1919 = vadd.f32 %v1917, %v1918
  %v1920 = vadd.f32 %v1874, %v1875
  %v1921 = vrot.slane %v1920, 4
  %v1922 = vadd.f32 %v1920, %v1921
  %v1923 = vrot.slane %v1922, 2
  %v1924 = vadd.f32 %v1922, %v1923
  %v1925 = vrot.slane %v1924, 1
  %v1926 = vadd.f32 %v1924, %v1925
  %v1927 = vadd.f32 %v1876, %v1877
  %v1928 = vrot.slane %v1927, 4
  %v1929 = vadd.f32 %v1927, %v1928
  %v1930 = vrot.slane %v1929, 2
  %v1931 = vadd.f32 %v1929, %v1930
  %v1932 = vrot.slane %v1931, 1
  %v1933 = vadd.f32 %v1931, %v1932
  %v1934 = vmul.f32 %v1884, 0.0625
  %v1935 = vmul.f32 %v1891, 0.0625
  %v1936 = vmul.f32 %v1898, 0.0625
  %v1937 = vmul.f32 %v1905, 0.0625
  %v1938 = vmul.f32 %v1912, 0.0625
  %v1939 = vmul.f32 %v1919, 0.0625
  %v1940 = vmul.f32 %v1926, 0.0625
  %v1941 = vmul.f32 %v1933, 0.0625
  %v1942 = vld [vmem:[%s3] sm:$0xff]
  %v1943 = vld [vmem:[%s3 + $0x8] sm:$0xff]
  %v1944 = vld [vmem:[%s3 + $0x10] sm:$0xff]
  %v1945 = vld [vmem:[%s3 + $0x18] sm:$0xff]
  %v1946 = vld [vmem:[%s3 + $0x20] sm:$0xff]
  %v1947 = vld [vmem:[%s3 + $0x28] sm:$0xff]
  %v1948 = vld [vmem:[%s3 + $0x30] sm:$0xff]
  %v1949 = vld [vmem:[%s3 + $0x38] sm:$0xff]
  %v1950 = vld [vmem:[%s3 + $0x40] sm:$0xff]
  %v1951 = vld [vmem:[%s3 + $0x48] sm:$0xff]
  %v1952 = vld [vmem:[%s3 + $0x50] sm:$0xff]
  %v1953 = vld [vmem:[%s3 + $0x58] sm:$0xff]
  %v1954 = vld [vmem:[%s3 + $0x60] sm:$0xff]
  %v1955 = vld [vmem:[%s3 + $0x68] sm:$0xff]
  %v1956 = vld [vmem:[%s3 + $0x70] sm:$0xff]
  %v1957 = vld [vmem:[%s3 + $0x78] sm:$0xff]
  %v1958 = vlaneseq
  %v1959 = vshrl.u32 %v1958, 7
  %v1960 = vsub.s32 1, %v1959
  %v1961 = vrot.slane %v22, %v1960
  %vm1970 = vcmask 1041409
  %v1971 = vsel %vm1970, %v1935, %v1934
  %vm1972 = vcmask 1042434
  %v1973 = vsel %vm1972, %v1936, %v1971
  %vm1974 = vcmask 1043459
  %v1975 = vsel %vm1974, %v1937, %v1973
  %vm1976 = vcmask 1044484
  %v1977 = vsel %vm1976, %v1938, %v1975
  %vm1978 = vcmask 1045509
  %v1979 = vsel %vm1978, %v1939, %v1977
  %vm1980 = vcmask 1046534
  %v1981 = vsel %vm1980, %v1940, %v1979
  %vm1982 = vcmask 1047559
  %v1983 = vsel %vm1982, %v1941, %v1981
  %1985 = vmatprep.subr.mxu0 0.0
  %1986 = vmatpush1.msra.mxu0 %v1942
  %1987 = vmatprep.subr.mxu0 0.0
  %1988 = vmatpush1.msra.mxu0 %v1943
  %1989 = vmatprep.subr.mxu0 0.0
  %1990 = vmatpush1.msra.mxu0 %v1944
  %1991 = vmatprep.subr.mxu0 0.0
  %1992 = vmatpush1.msra.mxu0 %v1945
  %1993 = vmatprep.subr.mxu0 0.0
  %1994 = vmatpush1.msra.mxu0 %v1946
  %1995 = vmatprep.subr.mxu0 0.0
  %1996 = vmatpush1.msra.mxu0 %v1947
  %1997 = vmatprep.subr.mxu0 0.0
  %1998 = vmatpush1.msra.mxu0 %v1948
  %1999 = vmatprep.subr.mxu0 0.0
  %2000 = vmatpush1.msra.mxu0 %v1949
  %2001 = vmatprep.subr.mxu0 0.0
  %2002 = vmatpush1.msra.mxu0 %v1950
  %2003 = vmatprep.subr.mxu0 0.0
  %2004 = vmatpush1.msra.mxu0 %v1951
  %2005 = vmatprep.subr.mxu0 0.0
  %2006 = vmatpush1.msra.mxu0 %v1952
  %2007 = vmatprep.subr.mxu0 0.0
  %2008 = vmatpush1.msra.mxu0 %v1953
  %2009 = vmatprep.subr.mxu0 0.0
  %2010 = vmatpush1.msra.mxu0 %v1954
  %2011 = vmatprep.subr.mxu0 0.0
  %2012 = vmatpush1.msra.mxu0 %v1955
  %2013 = vmatprep.subr.mxu0 0.0
  %2014 = vmatpush1.msra.mxu0 %v1956
  %2015 = vmatprep.subr.mxu0 0.0
  %2016 = vmatpush1.msra.mxu0 %v1957
  %2017 = vmatprep.subr.mxu0 0.0
  %2018 = vmatpush1.msra.mxu0 0.0
  %2019 = vmatprep.subr.mxu0 0.0
  %2020 = vmatpush1.msra.mxu0 0.0
  %2021 = vmatprep.subr.mxu0 0.0
  %2022 = vmatpush1.msra.mxu0 0.0
  %2023 = vmatprep.subr.mxu0 0.0
  %2024 = vmatpush1.msra.mxu0 0.0
  %2025 = vmatprep.subr.mxu0 0.0
  %2026 = vmatpush1.msra.mxu0 0.0
  %2027 = vmatprep.subr.mxu0 0.0
  %2028 = vmatpush1.msra.mxu0 0.0
  %2029 = vmatprep.subr.mxu0 0.0
  %2030 = vmatpush1.msra.mxu0 0.0
  %2031 = vmatprep.subr.mxu0 0.0
  %2032 = vmatpush1.msra.mxu0 0.0
  %2033 = vmatprep.subr.mxu0 0.0
  %2034 = vmatpush1.msra.mxu0 0.0
  %2035 = vmatprep.subr.mxu0 0.0
  %2036 = vmatpush1.msra.mxu0 0.0
  %2037 = vmatprep.subr.mxu0 0.0
  %2038 = vmatpush1.msra.mxu0 0.0
  %2039 = vmatprep.subr.mxu0 0.0
  %2040 = vmatpush1.msra.mxu0 0.0
  %2041 = vmatprep.subr.mxu0 0.0
  %2042 = vmatpush1.msra.mxu0 0.0
  %2043 = vmatprep.subr.mxu0 0.0
  %2044 = vmatpush1.msra.mxu0 0.0
  %2045 = vmatprep.subr.mxu0 0.0
  %2046 = vmatpush1.msra.mxu0 0.0
  %2047 = vmatprep.subr.mxu0 0.0
  %2048 = vmatpush1.msra.mxu0 0.0
  %2049 = vmatprep.mubr.f32.mxu0 0.0
  %2050 = vmatmul.mubr.f32.gmra.mrb[0].mxu0 %v1983
  %v2051 = vpop.f32.mrb[0].mxu0
  %v2052 = vadd.f32 %v1961, %v2051
  %v2053 = vpop.f32.mrb[0].mxu0
  %2054 = vdwg.mxu0
  %v2055 = vmax.f32 %v2052, 0.0
  %v2056 = vld [vmem:[%s4] sm:$0xff]
  %v2057 = vld [vmem:[%s4 + $0x8] sm:$0xff]
  %v2058 = vld [vmem:[%s4 + $0x10] sm:$0xff]
  %v2059 = vld [vmem:[%s4 + $0x18] sm:$0xff]
  %v2060 = vld [vmem:[%s4 + $0x20] sm:$0xff]
  %v2061 = vld [vmem:[%s4 + $0x28] sm:$0xff]
  %v2062 = vld [vmem:[%s4 + $0x30] sm:$0xff]
  %v2063 = vld [vmem:[%s4 + $0x38] sm:$0xff]
  %v2064 = vld [vmem:[%s4 + $0x40] sm:$0xff]
  %v2065 = vld [vmem:[%s4 + $0x48] sm:$0xff]
  %v2066 = vld [vmem:[%s4 + $0x50] sm:$0xff]
  %v2067 = vld [vmem:[%s4 + $0x58] sm:$0xff]
  %v2068 = vld [vmem:[%s4 + $0x60] sm:$0xff]
  %v2069 = vld [vmem:[%s4 + $0x68] sm:$0xff]
  %v2070 = vld [vmem:[%s4 + $0x70] sm:$0xff]
  %v2071 = vld [vmem:[%s4 + $0x78] sm:$0xff]
  %v2072 = vlaneseq
  %v2073 = vshrl.u32 %v2072, 7
  %v2074 = vsub.s32 2, %v2073
  %v2075 = vrot.slane %v22, %v2074
  %2076 = vmatprep.subr.mxu0 0.0
  %2077 = vmatpush1.msra.mxu0 %v2056
  %2078 = vmatprep.subr.mxu0 0.0
  %2079 = vmatpush1.msra.mxu0 %v2057
  %2080 = vmatprep.subr.mxu0 0.0
  %2081 = vmatpush1.msra.mxu0 %v2058
  %2082 = vmatprep.subr.mxu0 0.0
  %2083 = vmatpush1.msra.mxu0 %v2059
  %2084 = vmatprep.subr.mxu0 0.0
  %2085 = vmatpush1.msra.mxu0 %v2060
  %2086 = vmatprep.subr.mxu0 0.0
  %2087 = vmatpush1.msra.mxu0 %v2061
  %2088 = vmatprep.subr.mxu0 0.0
  %2089 = vmatpush1.msra.mxu0 %v2062
  %2090 = vmatprep.subr.mxu0 0.0
  %2091 = vmatpush1.msra.mxu0 %v2063
  %2092 = vmatprep.subr.mxu0 0.0
  %2093 = vmatpush1.msra.mxu0 %v2064
  %2094 = vmatprep.subr.mxu0 0.0
  %2095 = vmatpush1.msra.mxu0 %v2065
  %2096 = vmatprep.subr.mxu0 0.0
  %2097 = vmatpush1.msra.mxu0 %v2066
  %2098 = vmatprep.subr.mxu0 0.0
  %2099 = vmatpush1.msra.mxu0 %v2067
  %2100 = vmatprep.subr.mxu0 0.0
  %2101 = vmatpush1.msra.mxu0 %v2068
  %2102 = vmatprep.subr.mxu0 0.0
  %2103 = vmatpush1.msra.mxu0 %v2069
  %2104 = vmatprep.subr.mxu0 0.0
  %2105 = vmatpush1.msra.mxu0 %v2070
  %2106 = vmatprep.subr.mxu0 0.0
  %2107 = vmatpush1.msra.mxu0 %v2071
  %2108 = vmatprep.subr.mxu0 0.0
  %2109 = vmatpush1.msra.mxu0 0.0
  %2110 = vmatprep.subr.mxu0 0.0
  %2111 = vmatpush1.msra.mxu0 0.0
  %2112 = vmatprep.subr.mxu0 0.0
  %2113 = vmatpush1.msra.mxu0 0.0
  %2114 = vmatprep.subr.mxu0 0.0
  %2115 = vmatpush1.msra.mxu0 0.0
  %2116 = vmatprep.subr.mxu0 0.0
  %2117 = vmatpush1.msra.mxu0 0.0
  %2118 = vmatprep.subr.mxu0 0.0
  %2119 = vmatpush1.msra.mxu0 0.0
  %2120 = vmatprep.subr.mxu0 0.0
  %2121 = vmatpush1.msra.mxu0 0.0
  %2122 = vmatprep.subr.mxu0 0.0
  %2123 = vmatpush1.msra.mxu0 0.0
  %2124 = vmatprep.subr.mxu0 0.0
  %2125 = vmatpush1.msra.mxu0 0.0
  %2126 = vmatprep.subr.mxu0 0.0
  %2127 = vmatpush1.msra.mxu0 0.0
  %2128 = vmatprep.subr.mxu0 0.0
  %2129 = vmatpush1.msra.mxu0 0.0
  %2130 = vmatprep.subr.mxu0 0.0
  %2131 = vmatpush1.msra.mxu0 0.0
  %2132 = vmatprep.subr.mxu0 0.0
  %2133 = vmatpush1.msra.mxu0 0.0
  %2134 = vmatprep.subr.mxu0 0.0
  %2135 = vmatpush1.msra.mxu0 0.0
  %2136 = vmatprep.subr.mxu0 0.0
  %2137 = vmatpush1.msra.mxu0 0.0
  %2138 = vmatprep.subr.mxu0 0.0
  %2139 = vmatpush1.msra.mxu0 0.0
  %2140 = vmatprep.mubr.f32.mxu0 0.0
  %2141 = vmatmul.mubr.f32.gmra.mrb[0].mxu0 %v2055
  %v2142 = vpop.f32.mrb[0].mxu0
  %v2143 = vadd.f32 %v2075, %v2142
  %v2144 = vpop.f32.mrb[0].mxu0
  %2145 = vdwg.mxu0
  %vm2146 = vcmask 64512
  %2147 = vst.msk [vmem:[%s5] sm:$0xff] %vm2146, %v2143
  // Predicated region
  $region22: #{xrr_forward.1} parent=0 // pred_check
    _
  $region23: #{xrr_forward.1} parent=0 // pred_check_branch
    %2149 = sbr.rel (0) target = $region25
  $region24: #{xrr_forward.1} parent=0 // pred_region
    _
  $region25: #{xrr_forward.1} parent=0 // pred_fallthru
    _
  // Predicated region
  $region26: #{xrr_forward.1} parent=0 // pred_check
    _
  $region27: #{xrr_forward.1} parent=0 // pred_check_branch
    %2151 = sbr.rel (0) target = $region29
  $region28: #{xrr_forward.1} parent=0 // pred_region
    _
  $region29: #{xrr_forward.1} parent=0 // pred_fallthru
    _

</llo_original>
